<compile_context>
chip_gen: v5e
topology: v5e:2x2
jax: 0.10.0
libtpu: 0.0.40
codegen_flags: <defaults>
</compile_context>

<pallas_src>
import functools
import math

import jax
import jax.numpy as jnp
from jax import lax
from jax.experimental import pallas as pl
from jax.experimental.pallas import tpu as pltpu


# ----------------------------------------------------------------------------- kernel

def seq_classification_kernel(data_ref, slab_ref, wbf_ref, out_ref, *,
                              f32_layout, bf16_layout, T, B, H):
    f32 = jnp.float32
    bf16 = jnp.bfloat16
    H2, H3, H4, H6, H8 = 2 * H, 3 * H, 4 * H, 6 * H, 8 * H

    def P(name):
        row, r, c = f32_layout[name]          # static python ints, lane-multiple widths
        return slab_ref[row:row + r, :c]

    def Q(name):
        row, r, c = bf16_layout[name]
        return wbf_ref[row:row + r, :c]

    def mm(a, b):
        return jnp.dot(a, b, preferred_element_type=f32)

    # ---- layer 0: input-gate work for BOTH directions in one batched matmul (off chain) ----
    # data rows 0:T*B, col 0 = x[t], col 1 = x[T-1-t] (cols 2.. are zero); weight rows 2.. zero.
    xin = data_ref[0:T * B, :]                               # (T*B, 128)
    xg = mm(xin, P("l0_ih")) + P("l0_b")                     # (T*B, 8H), interleaved gate cols

    # ---- layer 0: fused fwd+bwd recurrence, fully unrolled, bf16 MXU operands --------------
    h = jnp.zeros((B, H2), f32)                              # lanes: [h_fwd | h_bwd]
    c = jnp.zeros((B, H2), f32)
    h_steps = []
    for it in range(T):
        g = xg[it * B:(it + 1) * B] + mm(h.astype(bf16), Q("l0_hh_bd"))   # (B, 8H)
        s = jax.nn.sigmoid(g)                                # one wide sigmoid per fused cell
        i_g = s[:, 0:H2]
        f_g = s[:, H2:H4]
        g_g = 2.0 * s[:, H4:H6] - 1.0                        # tanh(x) = 2*sigmoid(2x) - 1
        o_g = s[:, H6:H8]
        c = f_g * c + i_g * g_g
        h = o_g * jnp.tanh(c)                                # one wide tanh for both directions
        h_steps.append(h)
    # block `it` holds [h_fwd at time it | h_bwd at time T-1-it]; stays in registers.
    hcat = jnp.concatenate(h_steps, axis=0)                  # (T*B, 2H)

    # ---- layer 1: input-gate work batched off the serial chain -----------------------------
    # TODO(synk): nn.LSTM inter-layer dropout (p=0.5) applies only in train mode; omitted.
    # r[it, 0:4H]  = h_fwd[it]      @ W_ih_l1f[fwd rows]
    # r[it, 4H:8H] = h_bwd[T-1-it]  @ W_ih_l1f[bwd rows]
    r = mm(hcat, P("l1_ih_bd"))                              # (T*B, 8H)
    b1f = P("l1f_b")                                         # (1, 4H)

    h1 = jnp.zeros((B, H), f32)
    c1 = jnp.zeros((B, H), f32)
    for t in range(T):
        xg1 = (r[t * B:(t + 1) * B, 0:H4]
               + r[(T - 1 - t) * B:(T - t) * B, H4:H8] + b1f)
        g = xg1 + mm(h1.astype(bf16), Q("l1f_hh"))           # (B, 4H)
        s = jax.nn.sigmoid(g)
        c1 = s[:, H:H2] * c1 + s[:, 0:H] * (2.0 * s[:, H2:H3] - 1.0)
        h1 = s[:, H3:H4] * jnp.tanh(c1)

    # Reverse direction of layer 1: lstm_output[-1][:, H:2H] is its FIRST step from the zero
    # state at t = T-1, so only one cell evaluation (and its W_hh is never needed).
    gb = (mm(h_steps[T - 1], P("l1b_wf")) + mm(h_steps[0], P("l1b_wb")) + P("l1b_b"))
    sb = jax.nn.sigmoid(gb)
    cb = sb[:, 0:H] * (2.0 * sb[:, H2:H3] - 1.0)
    h1b = sb[:, H3:H4] * jnp.tanh(cb)

    # ---- FC head (dropout1 / dropout2 are identity in eval mode); all lane-dense views -----
    audio = data_ref[T * B:T * B + B, :]                     # (B, 128), cols 8.. are zero
    a = jnp.maximum(mm(audio, P("fc1_w")) + P("fc1_b"), 0.0)                 # (B, 128)
    z = jnp.maximum(mm(h1, P("fc2_wf")) + mm(h1b, P("fc2_wb"))
                    + mm(a, P("fc2_wa")) + P("fc2_b"), 0.0)                  # (B, 128)
    out_ref[...] = mm(z, P("fc3_w")) + P("fc3_b")            # (B, 128); cols 16.. are zero


# ----------------------------------------------------------------------------- wrapper

def pack_params(named_params, lane_width, dtype, row_align):
    """Pack parameter tensors into one (rows, lane_width) slab (single DMA).

    Each tensor is zero-padded to `lane_width` lanes and to a multiple of `row_align` rows so
    every static slice inside the kernel is tile aligned.
    Returns (slab, layout) with layout[name] = (row_offset, rows, cols) as python ints.
    """
    layout = {}
    blocks = []
    row = 0
    for name, arr in named_params:
        arr = jnp.asarray(arr, dtype)
        r, c = arr.shape
        rp = ((r + row_align - 1) // row_align) * row_align
        block = jnp.zeros((rp, lane_width), dtype).at[:r, :c].set(arr)
        layout[name] = (row, r, c)
        blocks.append(block)
        row += rp
    return jnp.concatenate(blocks, axis=0), layout


def sequence_classification_forward(temporal, audio, slab, wbf, f32_layout, bf16_layout, H):
    """temporal: (B, T, 1), audio: (B, 8) -> logits (B, 16)."""
    B, T, _ = temporal.shape

    # One lane-dense input array: rows 0:T*B carry [x[t], x[T-1-t], 0...]; rows T*B:+B carry audio.
    x_fwd = jnp.transpose(temporal, (1, 0, 2)).reshape(T * B).astype(jnp.float32)
    x_bwd = jnp.transpose(temporal[:, ::-1, :], (1, 0, 2)).reshape(T * B).astype(jnp.float32)
    rows = T * B + B
    rows_pad = ((rows + 7) // 8) * 8
    data = jnp.zeros((rows_pad, 128), jnp.float32)
    data = data.at[0:T * B, 0].set(x_fwd)
    data = data.at[0:T * B, 1].set(x_bwd)
    data = data.at[T * B:T * B + B, 0:8].set(audio.astype(jnp.float32))

    inputs = [data, slab, wbf]

    def full_spec(arr):
        nd = arr.ndim
        return pl.BlockSpec(arr.shape, lambda *_, _nd=nd: (0,) * _nd)

    kernel = functools.partial(seq_classification_kernel,
                               f32_layout=f32_layout, bf16_layout=bf16_layout,
                               T=T, B=B, H=H)

    out = pl.pallas_call(
        kernel,
        out_shape=jax.ShapeDtypeStruct((B, 128), jnp.float32),   # lane-dense, unmasked store
        grid=(1,),
        in_specs=[full_spec(a) for a in inputs],
        out_specs=pl.BlockSpec((B, 128), lambda i: (0, 0)),
        compiler_params=pltpu.CompilerParams(dimension_semantics=("arbitrary",)),
    )(*inputs)
    return out[:, :16]


# ----------------------------------------------------------------------------- params

def _uniform(key, shape, bound):
    return jax.random.uniform(key, shape, jnp.float32, -bound, bound)


def make_params(key, H):
    """Deterministic parameter init mirroring the PyTorch module's shapes."""
    keys = iter(jax.random.split(key, 32))
    k_lstm = 1.0 / math.sqrt(H)

    def lstm_dir(in_dim):
        w_ih = _uniform(next(keys), (4 * H, in_dim), k_lstm)
        w_hh = _uniform(next(keys), (4 * H, H), k_lstm)
        b_ih = _uniform(next(keys), (4 * H,), k_lstm)
        b_hh = _uniform(next(keys), (4 * H,), k_lstm)
        return (w_ih, w_hh, b_ih, b_hh)

    l0f = lstm_dir(1)          # layer 0 forward  (input_size = 1)
    l0b = lstm_dir(1)          # layer 0 backward
    l1f = lstm_dir(2 * H)      # layer 1 forward  (input = 2H from bidirectional layer 0)
    l1b = lstm_dir(2 * H)      # layer 1 backward

    fc1_w = _uniform(next(keys), (H, 8), 1.0 / math.sqrt(8))
    fc1_b = _uniform(next(keys), (H,), 1.0 / math.sqrt(8))
    fc2_w = _uniform(next(keys), (H, 3 * H), 1.0 / math.sqrt(3 * H))
    fc2_b = _uniform(next(keys), (H,), 1.0 / math.sqrt(3 * H))
    fc3_w = _uniform(next(keys), (16, H), 1.0 / math.sqrt(H))
    fc3_b = _uniform(next(keys), (16,), 1.0 / math.sqrt(H))
    return (l0f, l0b, l1f, l1b, fc1_w, fc1_b, fc2_w, fc2_b, fc3_w, fc3_b)


def prep_named_params(raw, H):
    """PyTorch-layout weights -> fused / interleaved / prescaled / lane-padded operands.

    Returns (f32_named, bf16_named) lists of (name, 2D array).  The 2x prescale of the g-gate
    columns (for tanh(x) = 2*sigmoid(2x) - 1) is folded into every g-gate contribution here.
    """
    assert H <= 128
    (l0f, l0b, l1f, l1b, fc1_w, fc1_b, fc2_w, fc2_b, fc3_w, fc3_b) = raw
    f32 = jnp.float32

    def pre_cols(w_t):                       # (in, 4H): scale g-gate columns by 2
        return w_t.at[:, 2 * H:3 * H].multiply(2.0)

    def pre_vec(b):                          # (4H,)
        return b.at[2 * H:3 * H].multiply(2.0)

    def interleave(mat_f, mat_b):            # (..., 4H) x2 -> (..., 8H): [i_f|i_b|f_f|f_b|...]
        blocks = []
        for g in range(4):
            blocks.append(mat_f[..., g * H:(g + 1) * H])
            blocks.append(mat_b[..., g * H:(g + 1) * H])
        return jnp.concatenate(blocks, axis=-1)

    # ---- layer 0 fused (block-diagonal W_hh, interleaved gate columns) ----------------------
    w_ih_f, w_hh_f, b_ih_f, b_hh_f = l0f
    w_ih_b, w_hh_b, b_ih_b, b_hh_b = l0b
    wihf, wihb = pre_cols(w_ih_f.T), pre_cols(w_ih_b.T)            # (1, 4H)
    whhf, whhb = pre_cols(w_hh_f.T), pre_cols(w_hh_b.T)            # (H, 4H)
    bf0 = pre_vec(b_ih_f + b_hh_f)[None, :]
    bb0 = pre_vec(b_ih_b + b_hh_b)[None, :]

    l0_ih = jnp.zeros((128, 8 * H), f32)                           # rows: [x_fwd, x_bwd, 0...]
    l0_ih = l0_ih.at[0:1].set(interleave(wihf, jnp.zeros_like(wihf)))
    l0_ih = l0_ih.at[1:2].set(interleave(jnp.zeros_like(wihb), wihb))
    l0_b = interleave(bf0, bb0)                                    # (1, 8H)
    l0_hh_bd = jnp.concatenate([interleave(whhf, jnp.zeros_like(whhf)),
                                interleave(jnp.zeros_like(whhb), whhb)], axis=0)   # (2H, 8H)

    # ---- layer 1 -----------------------------------------------------------------------------
    w_ih_1f, w_hh_1f, b_ih_1f, b_hh_1f = l1f
    w_ih_1b, _, b_ih_1b, b_hh_1b = l1b
    wih1f = pre_cols(w_ih_1f.T)                                    # (2H, 4H)
    wih1b = pre_cols(w_ih_1b.T)                                    # (2H, 4H)
    whh1f = pre_cols(w_hh_1f.T)                                    # (H, 4H)
    b1f = pre_vec(b_ih_1f + b_hh_1f)[None, :]                      # (1, 4H)
    b1b = pre_vec(b_ih_1b + b_hh_1b)[None, :]                      # (1, 4H)

    # block-diag so R = hcat @ l1_ih_bd gives fwd-gate work in cols 0:4H (time order) and
    # bwd-gate work in cols 4H:8H (time-reversed block order).
    l1_ih_bd = jnp.zeros((2 * H, 8 * H), f32)
    l1_ih_bd = l1_ih_bd.at[0:H, 0:4 * H].set(wih1f[0:H])
    l1_ih_bd = l1_ih_bd.at[H:2 * H, 4 * H:8 * H].set(wih1f[H:2 * H])
    # reverse direction, single step: split by input half with zero-padded rows (no lane concat)
    l1b_wf = jnp.zeros((2 * H, 4 * H), f32).at[0:H].set(wih1b[0:H])
    l1b_wb = jnp.zeros((2 * H, 4 * H), f32).at[H:2 * H].set(wih1b[H:2 * H])

    # ---- FC head, zero-padded to lane-dense 128-wide views -----------------------------------
    fc1_wp = jnp.zeros((128, 128), f32).at[0:8, 0:H].set(fc1_w.T)
    fc1_bp = jnp.zeros((1, 128), f32).at[0, 0:H].set(fc1_b)
    fc2t = fc2_w.T                                                 # (3H, H)
    fc2_wf = jnp.zeros((H, 128), f32).at[:, 0:H].set(fc2t[0:H])
    fc2_wb = jnp.zeros((H, 128), f32).at[:, 0:H].set(fc2t[H:2 * H])
    fc2_wa = jnp.zeros((128, 128), f32).at[0:H, 0:H].set(fc2t[2 * H:3 * H])
    fc2_bp = jnp.zeros((1, 128), f32).at[0, 0:H].set(fc2_b)
    fc3_wp = jnp.zeros((128, 128), f32).at[0:H, 0:16].set(fc3_w.T)
    fc3_bp = jnp.zeros((1, 128), f32).at[0, 0:16].set(fc3_b)

    f32_named = [
        ("l0_ih", l0_ih), ("l0_b", l0_b),
        ("l1_ih_bd", l1_ih_bd), ("l1f_b", b1f),
        ("l1b_wf", l1b_wf), ("l1b_wb", l1b_wb), ("l1b_b", b1b),
        ("fc1_w", fc1_wp), ("fc1_b", fc1_bp),
        ("fc2_wf", fc2_wf), ("fc2_wb", fc2_wb), ("fc2_wa", fc2_wa), ("fc2_b", fc2_bp),
        ("fc3_w", fc3_wp), ("fc3_b", fc3_bp),
    ]
    # recurrent (on-chain) weights shipped in bf16 so the serial matmuls are single-pass MXU ops
    bf16_named = [("l0_hh_bd", l0_hh_bd), ("l1f_hh", whh1f)]
    return f32_named, bf16_named


# ----------------------------------------------------------------------------- reference

def reference_forward(temporal, audio, raw, H):
    """Pure-JAX mirror of the PyTorch eval-mode forward (correctness check)."""
    (l0f, l0b, l1f, l1b, fc1_w, fc1_b, fc2_w, fc2_b, fc3_w, fc3_b) = raw
    hp = lax.Precision.HIGHEST
    dot = lambda a, b: jnp.dot(a, b, precision=hp)

    x = jnp.transpose(temporal, (1, 0, 2)).astype(jnp.float32)     # (T, B, 1)
    T, B, _ = x.shape

    def run_dir(seq, p, reverse):
        w_ih, w_hh, b_ih, b_hh = p

        def cell(carry, x_t):
            h, c = carry
            gates = dot(x_t, w_ih.T) + dot(h, w_hh.T) + b_ih + b_hh
            i = jax.nn.sigmoid(gates[:, :H])
            f = jax.nn.sigmoid(gates[:, H:2 * H])
            g = jnp.tanh(gates[:, 2 * H:3 * H])
            o = jax.nn.sigmoid(gates[:, 3 * H:])
            c = f * c + i * g
            h = o * jnp.tanh(c)
            return (h, c), h

        inp = seq[::-1] if reverse else seq
        init = (jnp.zeros((B, H), jnp.float32), jnp.zeros((B, H), jnp.float32))
        _, hs = lax.scan(cell, init, inp)
        return hs[::-1] if reverse else hs                          # indexed by time

    h0f = run_dir(x, l0f, False)
    h0b = run_dir(x, l0b, True)
    seq0 = jnp.concatenate([h0f, h0b], axis=-1)                     # (T, B, 2H)
    h1f = run_dir(seq0, l1f, False)
    h1b = run_dir(seq0, l1b, True)
    lstm_last = jnp.concatenate([h1f[-1], h1b[-1]], axis=-1)        # lstm_output[-1]
    a = jax.nn.relu(dot(audio.astype(jnp.float32), fc1_w.T) + fc1_b)
    z = jax.nn.relu(dot(jnp.concatenate([lstm_last, a], axis=1), fc2_w.T) + fc2_b)
    return dot(z, fc3_w.T) + fc3_b


# ----------------------------------------------------------------------------- main

if __name__ == "__main__":
    # B=8 fills the sublane tile; module default hidden_size=64 also works (H=32 keeps it small).
    B, T, H = 8, 8, 32

    key = jax.random.PRNGKey(0)
    k_temp, k_audio, k_param = jax.random.split(key, 3)
    temporal = jax.random.normal(k_temp, (B, T, 1), jnp.float32)
    audio = jax.random.normal(k_audio, (B, 8), jnp.float32)

    raw_params = make_params(k_param, H)
    f32_named, bf16_named = prep_named_params(raw_params, H)
    lane_width = max(128, ((8 * H + 127) // 128) * 128)
    slab, f32_layout = pack_params(f32_named, lane_width, jnp.float32, 8)
    wbf, bf16_layout = pack_params(bf16_named, lane_width, jnp.bfloat16, 16)

    out = sequence_classification_forward(temporal, audio, slab, wbf,
                                          f32_layout, bf16_layout, H)
    out = jax.block_until_ready(out)

    assert out.shape == (B, 16), out.shape
    assert bool(jnp.all(jnp.isfinite(out)))

    ref = reference_forward(temporal, audio, raw_params, H)
    # bf16 recurrent-matmul operands compound a little rounding error across the 16 serial steps.
    assert bool(jnp.allclose(out, ref, rtol=4e-2, atol=4e-2)), (out, ref)

    print("KERNEL_OK")
</pallas_src>

<mosaic_0001>
module attributes {stable_mosaic.version = 11 : i64} {
  func.func @seq_classification_kernel(%arg0: i32, %arg1: memref<72x128xf32, #tpu.memory_space<vmem>>, %arg2: memref<816x256xf32, #tpu.memory_space<vmem>>, %arg3: memref<96x256xbf16, #tpu.memory_space<vmem>>, %arg4: memref<8x128xf32, #tpu.memory_space<vmem>>) attributes {dimension_semantics = [#tpu.dimension_semantics<arbitrary>], iteration_bounds = array<i64: 1>, scalar_prefetch = 0 : i64, scratch_operands = 0 : i64, tpu.core_type = #tpu.core_type<tc>, window_params = [{pipeline_mode = #tpu.pipeline_mode<synchronous>, transform_indices = @transform_0, window_bounds = array<i64: 72, 128>}, {pipeline_mode = #tpu.pipeline_mode<synchronous>, transform_indices = @transform_1, window_bounds = array<i64: 816, 256>}, {pipeline_mode = #tpu.pipeline_mode<synchronous>, transform_indices = @transform_2, window_bounds = array<i64: 96, 256>}, {pipeline_mode = #tpu.pipeline_mode<synchronous>, transform_indices = @transform_3, window_bounds = array<i64: 8, 128>}]} {
    %c0 = arith.constant 0 : index
    %c0_0 = arith.constant 0 : index
    %0 = vector.load %arg1[%c0, %c0_0] : memref<72x128xf32, #tpu.memory_space<vmem>>, vector<64x128xf32>
    %c0_1 = arith.constant 0 : index
    %c0_2 = arith.constant 0 : index
    %1 = vector.load %arg2[%c0_1, %c0_2] : memref<816x256xf32, #tpu.memory_space<vmem>>, vector<128x256xf32>
    %cst = arith.constant dense<0.000000e+00> : vector<64x256xf32>
    %2 = tpu.matmul %0, %1, %cst {dimension_numbers = #tpu.dot_dimension_numbers<[1], [0], [0], [1], [0, 0, 1, 1], [], []>} : vector<64x128xf32>, vector<128x256xf32>, vector<64x256xf32> -> vector<64x256xf32>
    %c128 = arith.constant 128 : index
    %c0_3 = arith.constant 0 : index
    %3 = vector.load %arg2[%c128, %c0_3] : memref<816x256xf32, #tpu.memory_space<vmem>>, vector<1x256xf32>
    %4 = vector.broadcast %3 : vector<1x256xf32> to vector<64x256xf32>
    %5 = arith.addf %2, %4 : vector<64x256xf32>
    %cst_4 = arith.constant 0.000000e+00 : f32
    %6 = vector.broadcast %cst_4 : f32 to vector<8x64xf32>
    %cst_5 = arith.constant 0.000000e+00 : f32
    %7 = vector.broadcast %cst_5 : f32 to vector<8x64xf32>
    %8 = vector.extract_strided_slice %5 {offsets = [0, 0], sizes = [8, 256], strides = [1, 1]} : vector<64x256xf32> to vector<8x256xf32>
    %9 = arith.truncf %6 : vector<8x64xf32> to vector<8x64xbf16>
    %c0_6 = arith.constant 0 : index
    %c0_7 = arith.constant 0 : index
    %10 = vector.load %arg3[%c0_6, %c0_7] : memref<96x256xbf16, #tpu.memory_space<vmem>>, vector<64x256xbf16>
    %cst_8 = arith.constant dense<0.000000e+00> : vector<8x256xf32>
    %11 = tpu.matmul %9, %10, %cst_8 {dimension_numbers = #tpu.dot_dimension_numbers<[1], [0], [0], [1], [0, 0, 1, 1], [], []>} : vector<8x64xbf16>, vector<64x256xbf16>, vector<8x256xf32> -> vector<8x256xf32>
    %12 = arith.addf %8, %11 : vector<8x256xf32>
    %13 = arith.negf %12 : vector<8x256xf32>
    %14 = math.exp %13 : vector<8x256xf32>
    %cst_9 = arith.constant 1.000000e+00 : f32
    %15 = vector.broadcast %cst_9 : f32 to vector<8x256xf32>
    %16 = arith.addf %15, %14 : vector<8x256xf32>
    %17 = arith.divf %15, %16 : vector<8x256xf32>
    %18 = vector.extract_strided_slice %17 {offsets = [0, 0], sizes = [8, 64], strides = [1, 1]} : vector<8x256xf32> to vector<8x64xf32>
    %19 = vector.extract_strided_slice %17 {offsets = [0, 64], sizes = [8, 64], strides = [1, 1]} : vector<8x256xf32> to vector<8x64xf32>
    %20 = vector.extract_strided_slice %17 {offsets = [0, 128], sizes = [8, 64], strides = [1, 1]} : vector<8x256xf32> to vector<8x64xf32>
    %cst_10 = arith.constant 2.000000e+00 : f32
    %21 = vector.broadcast %cst_10 : f32 to vector<8x64xf32>
    %22 = arith.mulf %21, %20 : vector<8x64xf32>
    %cst_11 = arith.constant 1.000000e+00 : f32
    %23 = vector.broadcast %cst_11 : f32 to vector<8x64xf32>
    %24 = arith.subf %22, %23 : vector<8x64xf32>
    %25 = vector.extract_strided_slice %17 {offsets = [0, 192], sizes = [8, 64], strides = [1, 1]} : vector<8x256xf32> to vector<8x64xf32>
    %26 = arith.mulf %19, %7 : vector<8x64xf32>
    %27 = arith.mulf %18, %24 : vector<8x64xf32>
    %28 = arith.addf %26, %27 : vector<8x64xf32>
    %29 = math.tanh %28 : vector<8x64xf32>
    %30 = arith.mulf %25, %29 : vector<8x64xf32>
    %31 = vector.extract_strided_slice %5 {offsets = [8, 0], sizes = [8, 256], strides = [1, 1]} : vector<64x256xf32> to vector<8x256xf32>
    %32 = arith.truncf %30 : vector<8x64xf32> to vector<8x64xbf16>
    %c0_12 = arith.constant 0 : index
    %c0_13 = arith.constant 0 : index
    %33 = vector.load %arg3[%c0_12, %c0_13] : memref<96x256xbf16, #tpu.memory_space<vmem>>, vector<64x256xbf16>
    %cst_14 = arith.constant dense<0.000000e+00> : vector<8x256xf32>
    %34 = tpu.matmul %32, %33, %cst_14 {dimension_numbers = #tpu.dot_dimension_numbers<[1], [0], [0], [1], [0, 0, 1, 1], [], []>} : vector<8x64xbf16>, vector<64x256xbf16>, vector<8x256xf32> -> vector<8x256xf32>
    %35 = arith.addf %31, %34 : vector<8x256xf32>
    %36 = arith.negf %35 : vector<8x256xf32>
    %37 = math.exp %36 : vector<8x256xf32>
    %cst_15 = arith.constant 1.000000e+00 : f32
    %38 = vector.broadcast %cst_15 : f32 to vector<8x256xf32>
    %39 = arith.addf %38, %37 : vector<8x256xf32>
    %40 = arith.divf %38, %39 : vector<8x256xf32>
    %41 = vector.extract_strided_slice %40 {offsets = [0, 0], sizes = [8, 64], strides = [1, 1]} : vector<8x256xf32> to vector<8x64xf32>
    %42 = vector.extract_strided_slice %40 {offsets = [0, 64], sizes = [8, 64], strides = [1, 1]} : vector<8x256xf32> to vector<8x64xf32>
    %43 = vector.extract_strided_slice %40 {offsets = [0, 128], sizes = [8, 64], strides = [1, 1]} : vector<8x256xf32> to vector<8x64xf32>
    %cst_16 = arith.constant 2.000000e+00 : f32
    %44 = vector.broadcast %cst_16 : f32 to vector<8x64xf32>
    %45 = arith.mulf %44, %43 : vector<8x64xf32>
    %cst_17 = arith.constant 1.000000e+00 : f32
    %46 = vector.broadcast %cst_17 : f32 to vector<8x64xf32>
    %47 = arith.subf %45, %46 : vector<8x64xf32>
    %48 = vector.extract_strided_slice %40 {offsets = [0, 192], sizes = [8, 64], strides = [1, 1]} : vector<8x256xf32> to vector<8x64xf32>
    %49 = arith.mulf %42, %28 : vector<8x64xf32>
    %50 = arith.mulf %41, %47 : vector<8x64xf32>
    %51 = arith.addf %49, %50 : vector<8x64xf32>
    %52 = math.tanh %51 : vector<8x64xf32>
    %53 = arith.mulf %48, %52 : vector<8x64xf32>
    %54 = vector.extract_strided_slice %5 {offsets = [16, 0], sizes = [8, 256], strides = [1, 1]} : vector<64x256xf32> to vector<8x256xf32>
    %55 = arith.truncf %53 : vector<8x64xf32> to vector<8x64xbf16>
    %c0_18 = arith.constant 0 : index
    %c0_19 = arith.constant 0 : index
    %56 = vector.load %arg3[%c0_18, %c0_19] : memref<96x256xbf16, #tpu.memory_space<vmem>>, vector<64x256xbf16>
    %cst_20 = arith.constant dense<0.000000e+00> : vector<8x256xf32>
    %57 = tpu.matmul %55, %56, %cst_20 {dimension_numbers = #tpu.dot_dimension_numbers<[1], [0], [0], [1], [0, 0, 1, 1], [], []>} : vector<8x64xbf16>, vector<64x256xbf16>, vector<8x256xf32> -> vector<8x256xf32>
    %58 = arith.addf %54, %57 : vector<8x256xf32>
    %59 = arith.negf %58 : vector<8x256xf32>
    %60 = math.exp %59 : vector<8x256xf32>
    %cst_21 = arith.constant 1.000000e+00 : f32
    %61 = vector.broadcast %cst_21 : f32 to vector<8x256xf32>
    %62 = arith.addf %61, %60 : vector<8x256xf32>
    %63 = arith.divf %61, %62 : vector<8x256xf32>
    %64 = vector.extract_strided_slice %63 {offsets = [0, 0], sizes = [8, 64], strides = [1, 1]} : vector<8x256xf32> to vector<8x64xf32>
    %65 = vector.extract_strided_slice %63 {offsets = [0, 64], sizes = [8, 64], strides = [1, 1]} : vector<8x256xf32> to vector<8x64xf32>
    %66 = vector.extract_strided_slice %63 {offsets = [0, 128], sizes = [8, 64], strides = [1, 1]} : vector<8x256xf32> to vector<8x64xf32>
    %cst_22 = arith.constant 2.000000e+00 : f32
    %67 = vector.broadcast %cst_22 : f32 to vector<8x64xf32>
    %68 = arith.mulf %67, %66 : vector<8x64xf32>
    %cst_23 = arith.constant 1.000000e+00 : f32
    %69 = vector.broadcast %cst_23 : f32 to vector<8x64xf32>
    %70 = arith.subf %68, %69 : vector<8x64xf32>
    %71 = vector.extract_strided_slice %63 {offsets = [0, 192], sizes = [8, 64], strides = [1, 1]} : vector<8x256xf32> to vector<8x64xf32>
    %72 = arith.mulf %65, %51 : vector<8x64xf32>
    %73 = arith.mulf %64, %70 : vector<8x64xf32>
    %74 = arith.addf %72, %73 : vector<8x64xf32>
    %75 = math.tanh %74 : vector<8x64xf32>
    %76 = arith.mulf %71, %75 : vector<8x64xf32>
    %77 = vector.extract_strided_slice %5 {offsets = [24, 0], sizes = [8, 256], strides = [1, 1]} : vector<64x256xf32> to vector<8x256xf32>
    %78 = arith.truncf %76 : vector<8x64xf32> to vector<8x64xbf16>
    %c0_24 = arith.constant 0 : index
    %c0_25 = arith.constant 0 : index
    %79 = vector.load %arg3[%c0_24, %c0_25] : memref<96x256xbf16, #tpu.memory_space<vmem>>, vector<64x256xbf16>
    %cst_26 = arith.constant dense<0.000000e+00> : vector<8x256xf32>
    %80 = tpu.matmul %78, %79, %cst_26 {dimension_numbers = #tpu.dot_dimension_numbers<[1], [0], [0], [1], [0, 0, 1, 1], [], []>} : vector<8x64xbf16>, vector<64x256xbf16>, vector<8x256xf32> -> vector<8x256xf32>
    %81 = arith.addf %77, %80 : vector<8x256xf32>
    %82 = arith.negf %81 : vector<8x256xf32>
    %83 = math.exp %82 : vector<8x256xf32>
    %cst_27 = arith.constant 1.000000e+00 : f32
    %84 = vector.broadcast %cst_27 : f32 to vector<8x256xf32>
    %85 = arith.addf %84, %83 : vector<8x256xf32>
    %86 = arith.divf %84, %85 : vector<8x256xf32>
    %87 = vector.extract_strided_slice %86 {offsets = [0, 0], sizes = [8, 64], strides = [1, 1]} : vector<8x256xf32> to vector<8x64xf32>
    %88 = vector.extract_strided_slice %86 {offsets = [0, 64], sizes = [8, 64], strides = [1, 1]} : vector<8x256xf32> to vector<8x64xf32>
    %89 = vector.extract_strided_slice %86 {offsets = [0, 128], sizes = [8, 64], strides = [1, 1]} : vector<8x256xf32> to vector<8x64xf32>
    %cst_28 = arith.constant 2.000000e+00 : f32
    %90 = vector.broadcast %cst_28 : f32 to vector<8x64xf32>
    %91 = arith.mulf %90, %89 : vector<8x64xf32>
    %cst_29 = arith.constant 1.000000e+00 : f32
    %92 = vector.broadcast %cst_29 : f32 to vector<8x64xf32>
    %93 = arith.subf %91, %92 : vector<8x64xf32>
    %94 = vector.extract_strided_slice %86 {offsets = [0, 192], sizes = [8, 64], strides = [1, 1]} : vector<8x256xf32> to vector<8x64xf32>
    %95 = arith.mulf %88, %74 : vector<8x64xf32>
    %96 = arith.mulf %87, %93 : vector<8x64xf32>
    %97 = arith.addf %95, %96 : vector<8x64xf32>
    %98 = math.tanh %97 : vector<8x64xf32>
    %99 = arith.mulf %94, %98 : vector<8x64xf32>
    %100 = vector.extract_strided_slice %5 {offsets = [32, 0], sizes = [8, 256], strides = [1, 1]} : vector<64x256xf32> to vector<8x256xf32>
    %101 = arith.truncf %99 : vector<8x64xf32> to vector<8x64xbf16>
    %c0_30 = arith.constant 0 : index
    %c0_31 = arith.constant 0 : index
    %102 = vector.load %arg3[%c0_30, %c0_31] : memref<96x256xbf16, #tpu.memory_space<vmem>>, vector<64x256xbf16>
    %cst_32 = arith.constant dense<0.000000e+00> : vector<8x256xf32>
    %103 = tpu.matmul %101, %102, %cst_32 {dimension_numbers = #tpu.dot_dimension_numbers<[1], [0], [0], [1], [0, 0, 1, 1], [], []>} : vector<8x64xbf16>, vector<64x256xbf16>, vector<8x256xf32> -> vector<8x256xf32>
    %104 = arith.addf %100, %103 : vector<8x256xf32>
    %105 = arith.negf %104 : vector<8x256xf32>
    %106 = math.exp %105 : vector<8x256xf32>
    %cst_33 = arith.constant 1.000000e+00 : f32
    %107 = vector.broadcast %cst_33 : f32 to vector<8x256xf32>
    %108 = arith.addf %107, %106 : vector<8x256xf32>
    %109 = arith.divf %107, %108 : vector<8x256xf32>
    %110 = vector.extract_strided_slice %109 {offsets = [0, 0], sizes = [8, 64], strides = [1, 1]} : vector<8x256xf32> to vector<8x64xf32>
    %111 = vector.extract_strided_slice %109 {offsets = [0, 64], sizes = [8, 64], strides = [1, 1]} : vector<8x256xf32> to vector<8x64xf32>
    %112 = vector.extract_strided_slice %109 {offsets = [0, 128], sizes = [8, 64], strides = [1, 1]} : vector<8x256xf32> to vector<8x64xf32>
    %cst_34 = arith.constant 2.000000e+00 : f32
    %113 = vector.broadcast %cst_34 : f32 to vector<8x64xf32>
    %114 = arith.mulf %113, %112 : vector<8x64xf32>
    %cst_35 = arith.constant 1.000000e+00 : f32
    %115 = vector.broadcast %cst_35 : f32 to vector<8x64xf32>
    %116 = arith.subf %114, %115 : vector<8x64xf32>
    %117 = vector.extract_strided_slice %109 {offsets = [0, 192], sizes = [8, 64], strides = [1, 1]} : vector<8x256xf32> to vector<8x64xf32>
    %118 = arith.mulf %111, %97 : vector<8x64xf32>
    %119 = arith.mulf %110, %116 : vector<8x64xf32>
    %120 = arith.addf %118, %119 : vector<8x64xf32>
    %121 = math.tanh %120 : vector<8x64xf32>
    %122 = arith.mulf %117, %121 : vector<8x64xf32>
    %123 = vector.extract_strided_slice %5 {offsets = [40, 0], sizes = [8, 256], strides = [1, 1]} : vector<64x256xf32> to vector<8x256xf32>
    %124 = arith.truncf %122 : vector<8x64xf32> to vector<8x64xbf16>
    %c0_36 = arith.constant 0 : index
    %c0_37 = arith.constant 0 : index
    %125 = vector.load %arg3[%c0_36, %c0_37] : memref<96x256xbf16, #tpu.memory_space<vmem>>, vector<64x256xbf16>
    %cst_38 = arith.constant dense<0.000000e+00> : vector<8x256xf32>
    %126 = tpu.matmul %124, %125, %cst_38 {dimension_numbers = #tpu.dot_dimension_numbers<[1], [0], [0], [1], [0, 0, 1, 1], [], []>} : vector<8x64xbf16>, vector<64x256xbf16>, vector<8x256xf32> -> vector<8x256xf32>
    %127 = arith.addf %123, %126 : vector<8x256xf32>
    %128 = arith.negf %127 : vector<8x256xf32>
    %129 = math.exp %128 : vector<8x256xf32>
    %cst_39 = arith.constant 1.000000e+00 : f32
    %130 = vector.broadcast %cst_39 : f32 to vector<8x256xf32>
    %131 = arith.addf %130, %129 : vector<8x256xf32>
    %132 = arith.divf %130, %131 : vector<8x256xf32>
    %133 = vector.extract_strided_slice %132 {offsets = [0, 0], sizes = [8, 64], strides = [1, 1]} : vector<8x256xf32> to vector<8x64xf32>
    %134 = vector.extract_strided_slice %132 {offsets = [0, 64], sizes = [8, 64], strides = [1, 1]} : vector<8x256xf32> to vector<8x64xf32>
    %135 = vector.extract_strided_slice %132 {offsets = [0, 128], sizes = [8, 64], strides = [1, 1]} : vector<8x256xf32> to vector<8x64xf32>
    %cst_40 = arith.constant 2.000000e+00 : f32
    %136 = vector.broadcast %cst_40 : f32 to vector<8x64xf32>
    %137 = arith.mulf %136, %135 : vector<8x64xf32>
    %cst_41 = arith.constant 1.000000e+00 : f32
    %138 = vector.broadcast %cst_41 : f32 to vector<8x64xf32>
    %139 = arith.subf %137, %138 : vector<8x64xf32>
    %140 = vector.extract_strided_slice %132 {offsets = [0, 192], sizes = [8, 64], strides = [1, 1]} : vector<8x256xf32> to vector<8x64xf32>
    %141 = arith.mulf %134, %120 : vector<8x64xf32>
    %142 = arith.mulf %133, %139 : vector<8x64xf32>
    %143 = arith.addf %141, %142 : vector<8x64xf32>
    %144 = math.tanh %143 : vector<8x64xf32>
    %145 = arith.mulf %140, %144 : vector<8x64xf32>
    %146 = vector.extract_strided_slice %5 {offsets = [48, 0], sizes = [8, 256], strides = [1, 1]} : vector<64x256xf32> to vector<8x256xf32>
    %147 = arith.truncf %145 : vector<8x64xf32> to vector<8x64xbf16>
    %c0_42 = arith.constant 0 : index
    %c0_43 = arith.constant 0 : index
    %148 = vector.load %arg3[%c0_42, %c0_43] : memref<96x256xbf16, #tpu.memory_space<vmem>>, vector<64x256xbf16>
    %cst_44 = arith.constant dense<0.000000e+00> : vector<8x256xf32>
    %149 = tpu.matmul %147, %148, %cst_44 {dimension_numbers = #tpu.dot_dimension_numbers<[1], [0], [0], [1], [0, 0, 1, 1], [], []>} : vector<8x64xbf16>, vector<64x256xbf16>, vector<8x256xf32> -> vector<8x256xf32>
    %150 = arith.addf %146, %149 : vector<8x256xf32>
    %151 = arith.negf %150 : vector<8x256xf32>
    %152 = math.exp %151 : vector<8x256xf32>
    %cst_45 = arith.constant 1.000000e+00 : f32
    %153 = vector.broadcast %cst_45 : f32 to vector<8x256xf32>
    %154 = arith.addf %153, %152 : vector<8x256xf32>
    %155 = arith.divf %153, %154 : vector<8x256xf32>
    %156 = vector.extract_strided_slice %155 {offsets = [0, 0], sizes = [8, 64], strides = [1, 1]} : vector<8x256xf32> to vector<8x64xf32>
    %157 = vector.extract_strided_slice %155 {offsets = [0, 64], sizes = [8, 64], strides = [1, 1]} : vector<8x256xf32> to vector<8x64xf32>
    %158 = vector.extract_strided_slice %155 {offsets = [0, 128], sizes = [8, 64], strides = [1, 1]} : vector<8x256xf32> to vector<8x64xf32>
    %cst_46 = arith.constant 2.000000e+00 : f32
    %159 = vector.broadcast %cst_46 : f32 to vector<8x64xf32>
    %160 = arith.mulf %159, %158 : vector<8x64xf32>
    %cst_47 = arith.constant 1.000000e+00 : f32
    %161 = vector.broadcast %cst_47 : f32 to vector<8x64xf32>
    %162 = arith.subf %160, %161 : vector<8x64xf32>
    %163 = vector.extract_strided_slice %155 {offsets = [0, 192], sizes = [8, 64], strides = [1, 1]} : vector<8x256xf32> to vector<8x64xf32>
    %164 = arith.mulf %157, %143 : vector<8x64xf32>
    %165 = arith.mulf %156, %162 : vector<8x64xf32>
    %166 = arith.addf %164, %165 : vector<8x64xf32>
    %167 = math.tanh %166 : vector<8x64xf32>
    %168 = arith.mulf %163, %167 : vector<8x64xf32>
    %169 = vector.extract_strided_slice %5 {offsets = [56, 0], sizes = [8, 256], strides = [1, 1]} : vector<64x256xf32> to vector<8x256xf32>
    %170 = arith.truncf %168 : vector<8x64xf32> to vector<8x64xbf16>
    %c0_48 = arith.constant 0 : index
    %c0_49 = arith.constant 0 : index
    %171 = vector.load %arg3[%c0_48, %c0_49] : memref<96x256xbf16, #tpu.memory_space<vmem>>, vector<64x256xbf16>
    %cst_50 = arith.constant dense<0.000000e+00> : vector<8x256xf32>
    %172 = tpu.matmul %170, %171, %cst_50 {dimension_numbers = #tpu.dot_dimension_numbers<[1], [0], [0], [1], [0, 0, 1, 1], [], []>} : vector<8x64xbf16>, vector<64x256xbf16>, vector<8x256xf32> -> vector<8x256xf32>
    %173 = arith.addf %169, %172 : vector<8x256xf32>
    %174 = arith.negf %173 : vector<8x256xf32>
    %175 = math.exp %174 : vector<8x256xf32>
    %cst_51 = arith.constant 1.000000e+00 : f32
    %176 = vector.broadcast %cst_51 : f32 to vector<8x256xf32>
    %177 = arith.addf %176, %175 : vector<8x256xf32>
    %178 = arith.divf %176, %177 : vector<8x256xf32>
    %179 = vector.extract_strided_slice %178 {offsets = [0, 0], sizes = [8, 64], strides = [1, 1]} : vector<8x256xf32> to vector<8x64xf32>
    %180 = vector.extract_strided_slice %178 {offsets = [0, 64], sizes = [8, 64], strides = [1, 1]} : vector<8x256xf32> to vector<8x64xf32>
    %181 = vector.extract_strided_slice %178 {offsets = [0, 128], sizes = [8, 64], strides = [1, 1]} : vector<8x256xf32> to vector<8x64xf32>
    %cst_52 = arith.constant 2.000000e+00 : f32
    %182 = vector.broadcast %cst_52 : f32 to vector<8x64xf32>
    %183 = arith.mulf %182, %181 : vector<8x64xf32>
    %cst_53 = arith.constant 1.000000e+00 : f32
    %184 = vector.broadcast %cst_53 : f32 to vector<8x64xf32>
    %185 = arith.subf %183, %184 : vector<8x64xf32>
    %186 = vector.extract_strided_slice %178 {offsets = [0, 192], sizes = [8, 64], strides = [1, 1]} : vector<8x256xf32> to vector<8x64xf32>
    %187 = arith.mulf %180, %166 : vector<8x64xf32>
    %188 = arith.mulf %179, %185 : vector<8x64xf32>
    %189 = arith.addf %187, %188 : vector<8x64xf32>
    %190 = math.tanh %189 : vector<8x64xf32>
    %191 = arith.mulf %186, %190 : vector<8x64xf32>
    %192 = tpu.concatenate %30, %53, %76, %99, %122, %145, %168, %191 in 0 : vector<8x64xf32>, vector<8x64xf32>, vector<8x64xf32>, vector<8x64xf32>, vector<8x64xf32>, vector<8x64xf32>, vector<8x64xf32>, vector<8x64xf32> -> vector<64x64xf32>
    %c136 = arith.constant 136 : index
    %c0_54 = arith.constant 0 : index
    %193 = vector.load %arg2[%c136, %c0_54] : memref<816x256xf32, #tpu.memory_space<vmem>>, vector<64x256xf32>
    %cst_55 = arith.constant dense<0.000000e+00> : vector<64x256xf32>
    %194 = tpu.matmul %192, %193, %cst_55 {dimension_numbers = #tpu.dot_dimension_numbers<[1], [0], [0], [1], [0, 0, 1, 1], [], []>} : vector<64x64xf32>, vector<64x256xf32>, vector<64x256xf32> -> vector<64x256xf32>
    %c200 = arith.constant 200 : index
    %c0_56 = arith.constant 0 : index
    %195 = vector.load %arg2[%c200, %c0_56] : memref<816x256xf32, #tpu.memory_space<vmem>>, vector<1x128xf32>
    %cst_57 = arith.constant 0.000000e+00 : f32
    %196 = vector.broadcast %cst_57 : f32 to vector<8x32xf32>
    %cst_58 = arith.constant 0.000000e+00 : f32
    %197 = vector.broadcast %cst_58 : f32 to vector<8x32xf32>
    %198 = vector.extract_strided_slice %194 {offsets = [0, 0], sizes = [8, 128], strides = [1, 1]} : vector<64x256xf32> to vector<8x128xf32>
    %199 = vector.extract_strided_slice %194 {offsets = [56, 128], sizes = [8, 128], strides = [1, 1]} : vector<64x256xf32> to vector<8x128xf32>
    %200 = arith.addf %198, %199 : vector<8x128xf32>
    %201 = vector.broadcast %195 : vector<1x128xf32> to vector<8x128xf32>
    %202 = arith.addf %200, %201 : vector<8x128xf32>
    %203 = arith.truncf %196 : vector<8x32xf32> to vector<8x32xbf16>
    %c64 = arith.constant 64 : index
    %c0_59 = arith.constant 0 : index
    %204 = vector.load %arg3[%c64, %c0_59] : memref<96x256xbf16, #tpu.memory_space<vmem>>, vector<32x128xbf16>
    %cst_60 = arith.constant dense<0.000000e+00> : vector<8x128xf32>
    %205 = tpu.matmul %203, %204, %cst_60 {dimension_numbers = #tpu.dot_dimension_numbers<[1], [0], [0], [1], [0, 0, 1, 1], [], []>} : vector<8x32xbf16>, vector<32x128xbf16>, vector<8x128xf32> -> vector<8x128xf32>
    %206 = arith.addf %202, %205 : vector<8x128xf32>
    %207 = arith.negf %206 : vector<8x128xf32>
    %208 = math.exp %207 : vector<8x128xf32>
    %cst_61 = arith.constant 1.000000e+00 : f32
    %209 = vector.broadcast %cst_61 : f32 to vector<8x128xf32>
    %210 = arith.addf %209, %208 : vector<8x128xf32>
    %211 = arith.divf %209, %210 : vector<8x128xf32>
    %212 = vector.extract_strided_slice %211 {offsets = [0, 32], sizes = [8, 32], strides = [1, 1]} : vector<8x128xf32> to vector<8x32xf32>
    %213 = arith.mulf %212, %197 : vector<8x32xf32>
    %214 = vector.extract_strided_slice %211 {offsets = [0, 0], sizes = [8, 32], strides = [1, 1]} : vector<8x128xf32> to vector<8x32xf32>
    %215 = vector.extract_strided_slice %211 {offsets = [0, 64], sizes = [8, 32], strides = [1, 1]} : vector<8x128xf32> to vector<8x32xf32>
    %cst_62 = arith.constant 2.000000e+00 : f32
    %216 = vector.broadcast %cst_62 : f32 to vector<8x32xf32>
    %217 = arith.mulf %216, %215 : vector<8x32xf32>
    %cst_63 = arith.constant 1.000000e+00 : f32
    %218 = vector.broadcast %cst_63 : f32 to vector<8x32xf32>
    %219 = arith.subf %217, %218 : vector<8x32xf32>
    %220 = arith.mulf %214, %219 : vector<8x32xf32>
    %221 = arith.addf %213, %220 : vector<8x32xf32>
    %222 = vector.extract_strided_slice %211 {offsets = [0, 96], sizes = [8, 32], strides = [1, 1]} : vector<8x128xf32> to vector<8x32xf32>
    %223 = math.tanh %221 : vector<8x32xf32>
    %224 = arith.mulf %222, %223 : vector<8x32xf32>
    %225 = vector.extract_strided_slice %194 {offsets = [8, 0], sizes = [8, 128], strides = [1, 1]} : vector<64x256xf32> to vector<8x128xf32>
    %226 = vector.extract_strided_slice %194 {offsets = [48, 128], sizes = [8, 128], strides = [1, 1]} : vector<64x256xf32> to vector<8x128xf32>
    %227 = arith.addf %225, %226 : vector<8x128xf32>
    %228 = vector.broadcast %195 : vector<1x128xf32> to vector<8x128xf32>
    %229 = arith.addf %227, %228 : vector<8x128xf32>
    %230 = arith.truncf %224 : vector<8x32xf32> to vector<8x32xbf16>
    %c64_64 = arith.constant 64 : index
    %c0_65 = arith.constant 0 : index
    %231 = vector.load %arg3[%c64_64, %c0_65] : memref<96x256xbf16, #tpu.memory_space<vmem>>, vector<32x128xbf16>
    %cst_66 = arith.constant dense<0.000000e+00> : vector<8x128xf32>
    %232 = tpu.matmul %230, %231, %cst_66 {dimension_numbers = #tpu.dot_dimension_numbers<[1], [0], [0], [1], [0, 0, 1, 1], [], []>} : vector<8x32xbf16>, vector<32x128xbf16>, vector<8x128xf32> -> vector<8x128xf32>
    %233 = arith.addf %229, %232 : vector<8x128xf32>
    %234 = arith.negf %233 : vector<8x128xf32>
    %235 = math.exp %234 : vector<8x128xf32>
    %cst_67 = arith.constant 1.000000e+00 : f32
    %236 = vector.broadcast %cst_67 : f32 to vector<8x128xf32>
    %237 = arith.addf %236, %235 : vector<8x128xf32>
    %238 = arith.divf %236, %237 : vector<8x128xf32>
    %239 = vector.extract_strided_slice %238 {offsets = [0, 32], sizes = [8, 32], strides = [1, 1]} : vector<8x128xf32> to vector<8x32xf32>
    %240 = arith.mulf %239, %221 : vector<8x32xf32>
    %241 = vector.extract_strided_slice %238 {offsets = [0, 0], sizes = [8, 32], strides = [1, 1]} : vector<8x128xf32> to vector<8x32xf32>
    %242 = vector.extract_strided_slice %238 {offsets = [0, 64], sizes = [8, 32], strides = [1, 1]} : vector<8x128xf32> to vector<8x32xf32>
    %cst_68 = arith.constant 2.000000e+00 : f32
    %243 = vector.broadcast %cst_68 : f32 to vector<8x32xf32>
    %244 = arith.mulf %243, %242 : vector<8x32xf32>
    %cst_69 = arith.constant 1.000000e+00 : f32
    %245 = vector.broadcast %cst_69 : f32 to vector<8x32xf32>
    %246 = arith.subf %244, %245 : vector<8x32xf32>
    %247 = arith.mulf %241, %246 : vector<8x32xf32>
    %248 = arith.addf %240, %247 : vector<8x32xf32>
    %249 = vector.extract_strided_slice %238 {offsets = [0, 96], sizes = [8, 32], strides = [1, 1]} : vector<8x128xf32> to vector<8x32xf32>
    %250 = math.tanh %248 : vector<8x32xf32>
    %251 = arith.mulf %249, %250 : vector<8x32xf32>
    %252 = vector.extract_strided_slice %194 {offsets = [16, 0], sizes = [8, 128], strides = [1, 1]} : vector<64x256xf32> to vector<8x128xf32>
    %253 = vector.extract_strided_slice %194 {offsets = [40, 128], sizes = [8, 128], strides = [1, 1]} : vector<64x256xf32> to vector<8x128xf32>
    %254 = arith.addf %252, %253 : vector<8x128xf32>
    %255 = vector.broadcast %195 : vector<1x128xf32> to vector<8x128xf32>
    %256 = arith.addf %254, %255 : vector<8x128xf32>
    %257 = arith.truncf %251 : vector<8x32xf32> to vector<8x32xbf16>
    %c64_70 = arith.constant 64 : index
    %c0_71 = arith.constant 0 : index
    %258 = vector.load %arg3[%c64_70, %c0_71] : memref<96x256xbf16, #tpu.memory_space<vmem>>, vector<32x128xbf16>
    %cst_72 = arith.constant dense<0.000000e+00> : vector<8x128xf32>
    %259 = tpu.matmul %257, %258, %cst_72 {dimension_numbers = #tpu.dot_dimension_numbers<[1], [0], [0], [1], [0, 0, 1, 1], [], []>} : vector<8x32xbf16>, vector<32x128xbf16>, vector<8x128xf32> -> vector<8x128xf32>
    %260 = arith.addf %256, %259 : vector<8x128xf32>
    %261 = arith.negf %260 : vector<8x128xf32>
    %262 = math.exp %261 : vector<8x128xf32>
    %cst_73 = arith.constant 1.000000e+00 : f32
    %263 = vector.broadcast %cst_73 : f32 to vector<8x128xf32>
    %264 = arith.addf %263, %262 : vector<8x128xf32>
    %265 = arith.divf %263, %264 : vector<8x128xf32>
    %266 = vector.extract_strided_slice %265 {offsets = [0, 32], sizes = [8, 32], strides = [1, 1]} : vector<8x128xf32> to vector<8x32xf32>
    %267 = arith.mulf %266, %248 : vector<8x32xf32>
    %268 = vector.extract_strided_slice %265 {offsets = [0, 0], sizes = [8, 32], strides = [1, 1]} : vector<8x128xf32> to vector<8x32xf32>
    %269 = vector.extract_strided_slice %265 {offsets = [0, 64], sizes = [8, 32], strides = [1, 1]} : vector<8x128xf32> to vector<8x32xf32>
    %cst_74 = arith.constant 2.000000e+00 : f32
    %270 = vector.broadcast %cst_74 : f32 to vector<8x32xf32>
    %271 = arith.mulf %270, %269 : vector<8x32xf32>
    %cst_75 = arith.constant 1.000000e+00 : f32
    %272 = vector.broadcast %cst_75 : f32 to vector<8x32xf32>
    %273 = arith.subf %271, %272 : vector<8x32xf32>
    %274 = arith.mulf %268, %273 : vector<8x32xf32>
    %275 = arith.addf %267, %274 : vector<8x32xf32>
    %276 = vector.extract_strided_slice %265 {offsets = [0, 96], sizes = [8, 32], strides = [1, 1]} : vector<8x128xf32> to vector<8x32xf32>
    %277 = math.tanh %275 : vector<8x32xf32>
    %278 = arith.mulf %276, %277 : vector<8x32xf32>
    %279 = vector.extract_strided_slice %194 {offsets = [24, 0], sizes = [8, 128], strides = [1, 1]} : vector<64x256xf32> to vector<8x128xf32>
    %280 = vector.extract_strided_slice %194 {offsets = [32, 128], sizes = [8, 128], strides = [1, 1]} : vector<64x256xf32> to vector<8x128xf32>
    %281 = arith.addf %279, %280 : vector<8x128xf32>
    %282 = vector.broadcast %195 : vector<1x128xf32> to vector<8x128xf32>
    %283 = arith.addf %281, %282 : vector<8x128xf32>
    %284 = arith.truncf %278 : vector<8x32xf32> to vector<8x32xbf16>
    %c64_76 = arith.constant 64 : index
    %c0_77 = arith.constant 0 : index
    %285 = vector.load %arg3[%c64_76, %c0_77] : memref<96x256xbf16, #tpu.memory_space<vmem>>, vector<32x128xbf16>
    %cst_78 = arith.constant dense<0.000000e+00> : vector<8x128xf32>
    %286 = tpu.matmul %284, %285, %cst_78 {dimension_numbers = #tpu.dot_dimension_numbers<[1], [0], [0], [1], [0, 0, 1, 1], [], []>} : vector<8x32xbf16>, vector<32x128xbf16>, vector<8x128xf32> -> vector<8x128xf32>
    %287 = arith.addf %283, %286 : vector<8x128xf32>
    %288 = arith.negf %287 : vector<8x128xf32>
    %289 = math.exp %288 : vector<8x128xf32>
    %cst_79 = arith.constant 1.000000e+00 : f32
    %290 = vector.broadcast %cst_79 : f32 to vector<8x128xf32>
    %291 = arith.addf %290, %289 : vector<8x128xf32>
    %292 = arith.divf %290, %291 : vector<8x128xf32>
    %293 = vector.extract_strided_slice %292 {offsets = [0, 32], sizes = [8, 32], strides = [1, 1]} : vector<8x128xf32> to vector<8x32xf32>
    %294 = arith.mulf %293, %275 : vector<8x32xf32>
    %295 = vector.extract_strided_slice %292 {offsets = [0, 0], sizes = [8, 32], strides = [1, 1]} : vector<8x128xf32> to vector<8x32xf32>
    %296 = vector.extract_strided_slice %292 {offsets = [0, 64], sizes = [8, 32], strides = [1, 1]} : vector<8x128xf32> to vector<8x32xf32>
    %cst_80 = arith.constant 2.000000e+00 : f32
    %297 = vector.broadcast %cst_80 : f32 to vector<8x32xf32>
    %298 = arith.mulf %297, %296 : vector<8x32xf32>
    %cst_81 = arith.constant 1.000000e+00 : f32
    %299 = vector.broadcast %cst_81 : f32 to vector<8x32xf32>
    %300 = arith.subf %298, %299 : vector<8x32xf32>
    %301 = arith.mulf %295, %300 : vector<8x32xf32>
    %302 = arith.addf %294, %301 : vector<8x32xf32>
    %303 = vector.extract_strided_slice %292 {offsets = [0, 96], sizes = [8, 32], strides = [1, 1]} : vector<8x128xf32> to vector<8x32xf32>
    %304 = math.tanh %302 : vector<8x32xf32>
    %305 = arith.mulf %303, %304 : vector<8x32xf32>
    %306 = vector.extract_strided_slice %194 {offsets = [32, 0], sizes = [8, 128], strides = [1, 1]} : vector<64x256xf32> to vector<8x128xf32>
    %307 = vector.extract_strided_slice %194 {offsets = [24, 128], sizes = [8, 128], strides = [1, 1]} : vector<64x256xf32> to vector<8x128xf32>
    %308 = arith.addf %306, %307 : vector<8x128xf32>
    %309 = vector.broadcast %195 : vector<1x128xf32> to vector<8x128xf32>
    %310 = arith.addf %308, %309 : vector<8x128xf32>
    %311 = arith.truncf %305 : vector<8x32xf32> to vector<8x32xbf16>
    %c64_82 = arith.constant 64 : index
    %c0_83 = arith.constant 0 : index
    %312 = vector.load %arg3[%c64_82, %c0_83] : memref<96x256xbf16, #tpu.memory_space<vmem>>, vector<32x128xbf16>
    %cst_84 = arith.constant dense<0.000000e+00> : vector<8x128xf32>
    %313 = tpu.matmul %311, %312, %cst_84 {dimension_numbers = #tpu.dot_dimension_numbers<[1], [0], [0], [1], [0, 0, 1, 1], [], []>} : vector<8x32xbf16>, vector<32x128xbf16>, vector<8x128xf32> -> vector<8x128xf32>
    %314 = arith.addf %310, %313 : vector<8x128xf32>
    %315 = arith.negf %314 : vector<8x128xf32>
    %316 = math.exp %315 : vector<8x128xf32>
    %cst_85 = arith.constant 1.000000e+00 : f32
    %317 = vector.broadcast %cst_85 : f32 to vector<8x128xf32>
    %318 = arith.addf %317, %316 : vector<8x128xf32>
    %319 = arith.divf %317, %318 : vector<8x128xf32>
    %320 = vector.extract_strided_slice %319 {offsets = [0, 32], sizes = [8, 32], strides = [1, 1]} : vector<8x128xf32> to vector<8x32xf32>
    %321 = arith.mulf %320, %302 : vector<8x32xf32>
    %322 = vector.extract_strided_slice %319 {offsets = [0, 0], sizes = [8, 32], strides = [1, 1]} : vector<8x128xf32> to vector<8x32xf32>
    %323 = vector.extract_strided_slice %319 {offsets = [0, 64], sizes = [8, 32], strides = [1, 1]} : vector<8x128xf32> to vector<8x32xf32>
    %cst_86 = arith.constant 2.000000e+00 : f32
    %324 = vector.broadcast %cst_86 : f32 to vector<8x32xf32>
    %325 = arith.mulf %324, %323 : vector<8x32xf32>
    %cst_87 = arith.constant 1.000000e+00 : f32
    %326 = vector.broadcast %cst_87 : f32 to vector<8x32xf32>
    %327 = arith.subf %325, %326 : vector<8x32xf32>
    %328 = arith.mulf %322, %327 : vector<8x32xf32>
    %329 = arith.addf %321, %328 : vector<8x32xf32>
    %330 = vector.extract_strided_slice %319 {offsets = [0, 96], sizes = [8, 32], strides = [1, 1]} : vector<8x128xf32> to vector<8x32xf32>
    %331 = math.tanh %329 : vector<8x32xf32>
    %332 = arith.mulf %330, %331 : vector<8x32xf32>
    %333 = vector.extract_strided_slice %194 {offsets = [40, 0], sizes = [8, 128], strides = [1, 1]} : vector<64x256xf32> to vector<8x128xf32>
    %334 = vector.extract_strided_slice %194 {offsets = [16, 128], sizes = [8, 128], strides = [1, 1]} : vector<64x256xf32> to vector<8x128xf32>
    %335 = arith.addf %333, %334 : vector<8x128xf32>
    %336 = vector.broadcast %195 : vector<1x128xf32> to vector<8x128xf32>
    %337 = arith.addf %335, %336 : vector<8x128xf32>
    %338 = arith.truncf %332 : vector<8x32xf32> to vector<8x32xbf16>
    %c64_88 = arith.constant 64 : index
    %c0_89 = arith.constant 0 : index
    %339 = vector.load %arg3[%c64_88, %c0_89] : memref<96x256xbf16, #tpu.memory_space<vmem>>, vector<32x128xbf16>
    %cst_90 = arith.constant dense<0.000000e+00> : vector<8x128xf32>
    %340 = tpu.matmul %338, %339, %cst_90 {dimension_numbers = #tpu.dot_dimension_numbers<[1], [0], [0], [1], [0, 0, 1, 1], [], []>} : vector<8x32xbf16>, vector<32x128xbf16>, vector<8x128xf32> -> vector<8x128xf32>
    %341 = arith.addf %337, %340 : vector<8x128xf32>
    %342 = arith.negf %341 : vector<8x128xf32>
    %343 = math.exp %342 : vector<8x128xf32>
    %cst_91 = arith.constant 1.000000e+00 : f32
    %344 = vector.broadcast %cst_91 : f32 to vector<8x128xf32>
    %345 = arith.addf %344, %343 : vector<8x128xf32>
    %346 = arith.divf %344, %345 : vector<8x128xf32>
    %347 = vector.extract_strided_slice %346 {offsets = [0, 32], sizes = [8, 32], strides = [1, 1]} : vector<8x128xf32> to vector<8x32xf32>
    %348 = arith.mulf %347, %329 : vector<8x32xf32>
    %349 = vector.extract_strided_slice %346 {offsets = [0, 0], sizes = [8, 32], strides = [1, 1]} : vector<8x128xf32> to vector<8x32xf32>
    %350 = vector.extract_strided_slice %346 {offsets = [0, 64], sizes = [8, 32], strides = [1, 1]} : vector<8x128xf32> to vector<8x32xf32>
    %cst_92 = arith.constant 2.000000e+00 : f32
    %351 = vector.broadcast %cst_92 : f32 to vector<8x32xf32>
    %352 = arith.mulf %351, %350 : vector<8x32xf32>
    %cst_93 = arith.constant 1.000000e+00 : f32
    %353 = vector.broadcast %cst_93 : f32 to vector<8x32xf32>
    %354 = arith.subf %352, %353 : vector<8x32xf32>
    %355 = arith.mulf %349, %354 : vector<8x32xf32>
    %356 = arith.addf %348, %355 : vector<8x32xf32>
    %357 = vector.extract_strided_slice %346 {offsets = [0, 96], sizes = [8, 32], strides = [1, 1]} : vector<8x128xf32> to vector<8x32xf32>
    %358 = math.tanh %356 : vector<8x32xf32>
    %359 = arith.mulf %357, %358 : vector<8x32xf32>
    %360 = vector.extract_strided_slice %194 {offsets = [48, 0], sizes = [8, 128], strides = [1, 1]} : vector<64x256xf32> to vector<8x128xf32>
    %361 = vector.extract_strided_slice %194 {offsets = [8, 128], sizes = [8, 128], strides = [1, 1]} : vector<64x256xf32> to vector<8x128xf32>
    %362 = arith.addf %360, %361 : vector<8x128xf32>
    %363 = vector.broadcast %195 : vector<1x128xf32> to vector<8x128xf32>
    %364 = arith.addf %362, %363 : vector<8x128xf32>
    %365 = arith.truncf %359 : vector<8x32xf32> to vector<8x32xbf16>
    %c64_94 = arith.constant 64 : index
    %c0_95 = arith.constant 0 : index
    %366 = vector.load %arg3[%c64_94, %c0_95] : memref<96x256xbf16, #tpu.memory_space<vmem>>, vector<32x128xbf16>
    %cst_96 = arith.constant dense<0.000000e+00> : vector<8x128xf32>
    %367 = tpu.matmul %365, %366, %cst_96 {dimension_numbers = #tpu.dot_dimension_numbers<[1], [0], [0], [1], [0, 0, 1, 1], [], []>} : vector<8x32xbf16>, vector<32x128xbf16>, vector<8x128xf32> -> vector<8x128xf32>
    %368 = arith.addf %364, %367 : vector<8x128xf32>
    %369 = arith.negf %368 : vector<8x128xf32>
    %370 = math.exp %369 : vector<8x128xf32>
    %cst_97 = arith.constant 1.000000e+00 : f32
    %371 = vector.broadcast %cst_97 : f32 to vector<8x128xf32>
    %372 = arith.addf %371, %370 : vector<8x128xf32>
    %373 = arith.divf %371, %372 : vector<8x128xf32>
    %374 = vector.extract_strided_slice %373 {offsets = [0, 32], sizes = [8, 32], strides = [1, 1]} : vector<8x128xf32> to vector<8x32xf32>
    %375 = arith.mulf %374, %356 : vector<8x32xf32>
    %376 = vector.extract_strided_slice %373 {offsets = [0, 0], sizes = [8, 32], strides = [1, 1]} : vector<8x128xf32> to vector<8x32xf32>
    %377 = vector.extract_strided_slice %373 {offsets = [0, 64], sizes = [8, 32], strides = [1, 1]} : vector<8x128xf32> to vector<8x32xf32>
    %cst_98 = arith.constant 2.000000e+00 : f32
    %378 = vector.broadcast %cst_98 : f32 to vector<8x32xf32>
    %379 = arith.mulf %378, %377 : vector<8x32xf32>
    %cst_99 = arith.constant 1.000000e+00 : f32
    %380 = vector.broadcast %cst_99 : f32 to vector<8x32xf32>
    %381 = arith.subf %379, %380 : vector<8x32xf32>
    %382 = arith.mulf %376, %381 : vector<8x32xf32>
    %383 = arith.addf %375, %382 : vector<8x32xf32>
    %384 = vector.extract_strided_slice %373 {offsets = [0, 96], sizes = [8, 32], strides = [1, 1]} : vector<8x128xf32> to vector<8x32xf32>
    %385 = math.tanh %383 : vector<8x32xf32>
    %386 = arith.mulf %384, %385 : vector<8x32xf32>
    %387 = vector.extract_strided_slice %194 {offsets = [56, 0], sizes = [8, 128], strides = [1, 1]} : vector<64x256xf32> to vector<8x128xf32>
    %388 = vector.extract_strided_slice %194 {offsets = [0, 128], sizes = [8, 128], strides = [1, 1]} : vector<64x256xf32> to vector<8x128xf32>
    %389 = arith.addf %387, %388 : vector<8x128xf32>
    %390 = vector.broadcast %195 : vector<1x128xf32> to vector<8x128xf32>
    %391 = arith.addf %389, %390 : vector<8x128xf32>
    %392 = arith.truncf %386 : vector<8x32xf32> to vector<8x32xbf16>
    %c64_100 = arith.constant 64 : index
    %c0_101 = arith.constant 0 : index
    %393 = vector.load %arg3[%c64_100, %c0_101] : memref<96x256xbf16, #tpu.memory_space<vmem>>, vector<32x128xbf16>
    %cst_102 = arith.constant dense<0.000000e+00> : vector<8x128xf32>
    %394 = tpu.matmul %392, %393, %cst_102 {dimension_numbers = #tpu.dot_dimension_numbers<[1], [0], [0], [1], [0, 0, 1, 1], [], []>} : vector<8x32xbf16>, vector<32x128xbf16>, vector<8x128xf32> -> vector<8x128xf32>
    %395 = arith.addf %391, %394 : vector<8x128xf32>
    %396 = arith.negf %395 : vector<8x128xf32>
    %397 = math.exp %396 : vector<8x128xf32>
    %cst_103 = arith.constant 1.000000e+00 : f32
    %398 = vector.broadcast %cst_103 : f32 to vector<8x128xf32>
    %399 = arith.addf %398, %397 : vector<8x128xf32>
    %400 = arith.divf %398, %399 : vector<8x128xf32>
    %401 = vector.extract_strided_slice %400 {offsets = [0, 32], sizes = [8, 32], strides = [1, 1]} : vector<8x128xf32> to vector<8x32xf32>
    %402 = arith.mulf %401, %383 : vector<8x32xf32>
    %403 = vector.extract_strided_slice %400 {offsets = [0, 0], sizes = [8, 32], strides = [1, 1]} : vector<8x128xf32> to vector<8x32xf32>
    %404 = vector.extract_strided_slice %400 {offsets = [0, 64], sizes = [8, 32], strides = [1, 1]} : vector<8x128xf32> to vector<8x32xf32>
    %cst_104 = arith.constant 2.000000e+00 : f32
    %405 = vector.broadcast %cst_104 : f32 to vector<8x32xf32>
    %406 = arith.mulf %405, %404 : vector<8x32xf32>
    %cst_105 = arith.constant 1.000000e+00 : f32
    %407 = vector.broadcast %cst_105 : f32 to vector<8x32xf32>
    %408 = arith.subf %406, %407 : vector<8x32xf32>
    %409 = arith.mulf %403, %408 : vector<8x32xf32>
    %410 = arith.addf %402, %409 : vector<8x32xf32>
    %411 = vector.extract_strided_slice %400 {offsets = [0, 96], sizes = [8, 32], strides = [1, 1]} : vector<8x128xf32> to vector<8x32xf32>
    %412 = math.tanh %410 : vector<8x32xf32>
    %413 = arith.mulf %411, %412 : vector<8x32xf32>
    %c208 = arith.constant 208 : index
    %c0_106 = arith.constant 0 : index
    %414 = vector.load %arg2[%c208, %c0_106] : memref<816x256xf32, #tpu.memory_space<vmem>>, vector<64x128xf32>
    %cst_107 = arith.constant dense<0.000000e+00> : vector<8x128xf32>
    %415 = tpu.matmul %191, %414, %cst_107 {dimension_numbers = #tpu.dot_dimension_numbers<[1], [0], [0], [1], [0, 0, 1, 1], [], []>} : vector<8x64xf32>, vector<64x128xf32>, vector<8x128xf32> -> vector<8x128xf32>
    %c272 = arith.constant 272 : index
    %c0_108 = arith.constant 0 : index
    %416 = vector.load %arg2[%c272, %c0_108] : memref<816x256xf32, #tpu.memory_space<vmem>>, vector<64x128xf32>
    %cst_109 = arith.constant dense<0.000000e+00> : vector<8x128xf32>
    %417 = tpu.matmul %30, %416, %cst_109 {dimension_numbers = #tpu.dot_dimension_numbers<[1], [0], [0], [1], [0, 0, 1, 1], [], []>} : vector<8x64xf32>, vector<64x128xf32>, vector<8x128xf32> -> vector<8x128xf32>
    %418 = arith.addf %415, %417 : vector<8x128xf32>
    %c336 = arith.constant 336 : index
    %c0_110 = arith.constant 0 : index
    %419 = vector.load %arg2[%c336, %c0_110] : memref<816x256xf32, #tpu.memory_space<vmem>>, vector<1x128xf32>
    %420 = vector.broadcast %419 : vector<1x128xf32> to vector<8x128xf32>
    %421 = arith.addf %418, %420 : vector<8x128xf32>
    %422 = arith.negf %421 : vector<8x128xf32>
    %423 = math.exp %422 : vector<8x128xf32>
    %cst_111 = arith.constant 1.000000e+00 : f32
    %424 = vector.broadcast %cst_111 : f32 to vector<8x128xf32>
    %425 = arith.addf %424, %423 : vector<8x128xf32>
    %426 = arith.divf %424, %425 : vector<8x128xf32>
    %427 = vector.extract_strided_slice %426 {offsets = [0, 0], sizes = [8, 32], strides = [1, 1]} : vector<8x128xf32> to vector<8x32xf32>
    %428 = vector.extract_strided_slice %426 {offsets = [0, 64], sizes = [8, 32], strides = [1, 1]} : vector<8x128xf32> to vector<8x32xf32>
    %cst_112 = arith.constant 2.000000e+00 : f32
    %429 = vector.broadcast %cst_112 : f32 to vector<8x32xf32>
    %430 = arith.mulf %429, %428 : vector<8x32xf32>
    %cst_113 = arith.constant 1.000000e+00 : f32
    %431 = vector.broadcast %cst_113 : f32 to vector<8x32xf32>
    %432 = arith.subf %430, %431 : vector<8x32xf32>
    %433 = arith.mulf %427, %432 : vector<8x32xf32>
    %434 = vector.extract_strided_slice %426 {offsets = [0, 96], sizes = [8, 32], strides = [1, 1]} : vector<8x128xf32> to vector<8x32xf32>
    %435 = math.tanh %433 : vector<8x32xf32>
    %436 = arith.mulf %434, %435 : vector<8x32xf32>
    %c64_114 = arith.constant 64 : index
    %c0_115 = arith.constant 0 : index
    %437 = vector.load %arg1[%c64_114, %c0_115] : memref<72x128xf32, #tpu.memory_space<vmem>>, vector<8x128xf32>
    %c344 = arith.constant 344 : index
    %c0_116 = arith.constant 0 : index
    %438 = vector.load %arg2[%c344, %c0_116] : memref<816x256xf32, #tpu.memory_space<vmem>>, vector<128x128xf32>
    %cst_117 = arith.constant dense<0.000000e+00> : vector<8x128xf32>
    %439 = tpu.matmul %437, %438, %cst_117 {dimension_numbers = #tpu.dot_dimension_numbers<[1], [0], [0], [1], [0, 0, 1, 1], [], []>} : vector<8x128xf32>, vector<128x128xf32>, vector<8x128xf32> -> vector<8x128xf32>
    %c472 = arith.constant 472 : index
    %c0_118 = arith.constant 0 : index
    %440 = vector.load %arg2[%c472, %c0_118] : memref<816x256xf32, #tpu.memory_space<vmem>>, vector<1x128xf32>
    %441 = vector.broadcast %440 : vector<1x128xf32> to vector<8x128xf32>
    %442 = arith.addf %439, %441 : vector<8x128xf32>
    %cst_119 = arith.constant 0.000000e+00 : f32
    %443 = vector.broadcast %cst_119 : f32 to vector<8x128xf32>
    %444 = arith.maximumf %442, %443 : vector<8x128xf32>
    %c480 = arith.constant 480 : index
    %c0_120 = arith.constant 0 : index
    %445 = vector.load %arg2[%c480, %c0_120] : memref<816x256xf32, #tpu.memory_space<vmem>>, vector<32x128xf32>
    %cst_121 = arith.constant dense<0.000000e+00> : vector<8x128xf32>
    %446 = tpu.matmul %413, %445, %cst_121 {dimension_numbers = #tpu.dot_dimension_numbers<[1], [0], [0], [1], [0, 0, 1, 1], [], []>} : vector<8x32xf32>, vector<32x128xf32>, vector<8x128xf32> -> vector<8x128xf32>
    %c512 = arith.constant 512 : index
    %c0_122 = arith.constant 0 : index
    %447 = vector.load %arg2[%c512, %c0_122] : memref<816x256xf32, #tpu.memory_space<vmem>>, vector<32x128xf32>
    %cst_123 = arith.constant dense<0.000000e+00> : vector<8x128xf32>
    %448 = tpu.matmul %436, %447, %cst_123 {dimension_numbers = #tpu.dot_dimension_numbers<[1], [0], [0], [1], [0, 0, 1, 1], [], []>} : vector<8x32xf32>, vector<32x128xf32>, vector<8x128xf32> -> vector<8x128xf32>
    %449 = arith.addf %446, %448 : vector<8x128xf32>
    %c544 = arith.constant 544 : index
    %c0_124 = arith.constant 0 : index
    %450 = vector.load %arg2[%c544, %c0_124] : memref<816x256xf32, #tpu.memory_space<vmem>>, vector<128x128xf32>
    %cst_125 = arith.constant dense<0.000000e+00> : vector<8x128xf32>
    %451 = tpu.matmul %444, %450, %cst_125 {dimension_numbers = #tpu.dot_dimension_numbers<[1], [0], [0], [1], [0, 0, 1, 1], [], []>} : vector<8x128xf32>, vector<128x128xf32>, vector<8x128xf32> -> vector<8x128xf32>
    %452 = arith.addf %449, %451 : vector<8x128xf32>
    %c672 = arith.constant 672 : index
    %c0_126 = arith.constant 0 : index
    %453 = vector.load %arg2[%c672, %c0_126] : memref<816x256xf32, #tpu.memory_space<vmem>>, vector<1x128xf32>
    %454 = vector.broadcast %453 : vector<1x128xf32> to vector<8x128xf32>
    %455 = arith.addf %452, %454 : vector<8x128xf32>
    %cst_127 = arith.constant 0.000000e+00 : f32
    %456 = vector.broadcast %cst_127 : f32 to vector<8x128xf32>
    %457 = arith.maximumf %455, %456 : vector<8x128xf32>
    %c680 = arith.constant 680 : index
    %c0_128 = arith.constant 0 : index
    %458 = vector.load %arg2[%c680, %c0_128] : memref<816x256xf32, #tpu.memory_space<vmem>>, vector<128x128xf32>
    %cst_129 = arith.constant dense<0.000000e+00> : vector<8x128xf32>
    %459 = tpu.matmul %457, %458, %cst_129 {dimension_numbers = #tpu.dot_dimension_numbers<[1], [0], [0], [1], [0, 0, 1, 1], [], []>} : vector<8x128xf32>, vector<128x128xf32>, vector<8x128xf32> -> vector<8x128xf32>
    %c808 = arith.constant 808 : index
    %c0_130 = arith.constant 0 : index
    %460 = vector.load %arg2[%c808, %c0_130] : memref<816x256xf32, #tpu.memory_space<vmem>>, vector<1x128xf32>
    %461 = vector.broadcast %460 : vector<1x128xf32> to vector<8x128xf32>
    %462 = arith.addf %459, %461 : vector<8x128xf32>
    %c0_131 = arith.constant 0 : index
    %c0_132 = arith.constant 0 : index
    %463 = vector.load %arg4[%c0_131, %c0_132] : memref<8x128xf32, #tpu.memory_space<vmem>>, vector<8x128xf32>
    tpu.vector_store %arg4[%c0_131, %c0_132], %462 {strides = array<i32>} : memref<8x128xf32, #tpu.memory_space<vmem>>, vector<8x128xf32>,
    return
  }
  func.func @transform_0(%arg0: i32) -> (i32, i32) {
    %c0_i32 = arith.constant 0 : i32
    %c0_i32_0 = arith.constant 0 : i32
    %c0_i32_1 = arith.constant 0 : i32
    return %c0_i32, %c0_i32_0 : i32, i32
  }
  func.func @transform_1(%arg0: i32) -> (i32, i32) {
    %c0_i32 = arith.constant 0 : i32
    %c0_i32_0 = arith.constant 0 : i32
    %c0_i32_1 = arith.constant 0 : i32
    return %c0_i32, %c0_i32_0 : i32, i32
  }
  func.func @transform_2(%arg0: i32) -> (i32, i32) {
    %c0_i32 = arith.constant 0 : i32
    %c0_i32_0 = arith.constant 0 : i32
    %c0_i32_1 = arith.constant 0 : i32
    return %c0_i32, %c0_i32_0 : i32, i32
  }
  func.func @transform_3(%arg0: i32) -> (i32, i32) {
    %c0_i32 = arith.constant 0 : i32
    %c0_i32_0 = arith.constant 0 : i32
    %c0_i32_1 = arith.constant 0 : i32
    return %c0_i32, %c0_i32_0 : i32, i32
  }
}

</mosaic_0001>

<llo_original>
// kernel: tpu_custom_call.1
$region0: #{tpu_custom_call.1}
  #allocation0 [shape = 'u32[]', space=smem, size = 0x4, offset = 0x4, fixed_abs, tag = 'smem constant byte address 0x4 - core index']
  #allocation1 [shape = 'u32[72,128]{1,0:T(1,128)}', space=vmem, size = 0x9000, scoped, tag = 'internal scratch']
  %s0 = inlined_call_operand.hbm [shape: f32[72,128], index: 0, kind: input, shape index: {}]
  %s1 = inlined_call_operand.hbm [shape: f32[816,256], index: 1, kind: input, shape index: {}]
  %s2 = inlined_call_operand.hbm [shape: bf16[96,256], index: 2, kind: input, shape index: {}]
  %s3 = inlined_call_operand.hbm [shape: f32[8,128], index: 3, kind: output, shape index: {}]
  %s4 = sld [smem:[#allocation0]]
  $region34: #{tpu_custom_call.1} parent=0
    _
  %s6 = ssub.s32 1, %s4
  %s7 = scalar_select 0, %s6, %s4
  $region1: #{tpu_custom_call.1} parent=0
    #allocation2 [shape = 'u8[36864]{0}', space=vmem, size = 0x9000, scoped, tag = 'input window, operand 0, single buffered']
    #allocation3 [shape = 's32[1]{0}', space=sflag, size = 0x4, scoped, tag = 'scoped memory for tpu_custom_call.1']
    #allocation4 [shape = 's32[1]{0}', space=sflag, size = 0x4, scoped, tag = 'scoped memory for tpu_custom_call.1']
    #allocation5 [shape = 'u8[835584]{0}', space=vmem, size = 0xcc000, scoped, tag = 'input window, operand 1, single buffered']
    #allocation6 [shape = 's32[1]{0}', space=sflag, size = 0x4, scoped, tag = 'scoped memory for tpu_custom_call.1']
    #allocation7 [shape = 'u8[49152]{0}', space=vmem, size = 0xc000, scoped, tag = 'input window, operand 2, single buffered']
    #allocation8 [shape = 'u8[4096]{0}', space=vmem, size = 0x1000, scoped, tag = 'output window, operand 0, single buffered']
    %8 = vsyncpa [#allocation3], 0
    %9 = vsyncpa [#allocation6], 0
    %10 = vsyncpa [#allocation4], 0
    // Predicated region
    $region2: #{tpu_custom_call.1} parent=1 // pred_check
      _
    $region3: #{tpu_custom_call.1} parent=1 // pred_check_branch
      %12 = sbr.rel (0) target = $region5
    $region4: #{tpu_custom_call.1} parent=1 // pred_region
      %14 = vsyncadd [#allocation3], 0
      %s15 = sshll.u32 %s0, 4
      %s16 = int_to_ptr.hbm [resolvable:$true] %s15
      %s17 = sshll.u32 [#allocation2], 4
      %s18 = int_to_ptr.vmem [resolvable:$true] %s17
      %23 = dma.hbm_to_vmem [thread:$0]  %s16, 1152, %s18, [#allocation3], 128, 128, 8
    $region5: #{tpu_custom_call.1} parent=1 // pred_fallthru
      _
    // Predicated region
    $region6: #{tpu_custom_call.1} parent=1 // pred_check
      _
    $region7: #{tpu_custom_call.1} parent=1 // pred_check_branch
      %25 = sbr.rel (0) target = $region9
    $region8: #{tpu_custom_call.1} parent=1 // pred_region
      %27 = vsyncadd [#allocation6], 0
      %s28 = sshll.u32 %s1, 4
      %s29 = int_to_ptr.hbm [resolvable:$true] %s28
      %s30 = sshll.u32 [#allocation5], 4
      %s31 = int_to_ptr.vmem [resolvable:$true] %s30
      %36 = dma.hbm_to_vmem [thread:$0]  %s29, 26112, %s31, [#allocation6], 256, 256, 16
    $region9: #{tpu_custom_call.1} parent=1 // pred_fallthru
      _
    // Predicated region
    $region10: #{tpu_custom_call.1} parent=1 // pred_check
      _
    $region11: #{tpu_custom_call.1} parent=1 // pred_check_branch
      %38 = sbr.rel (0) target = $region13
    $region12: #{tpu_custom_call.1} parent=1 // pred_region
      %40 = vsyncadd [#allocation6], 0
      %s41 = sshll.u32 %s2, 4
      %s42 = int_to_ptr.hbm [resolvable:$true] %s41
      %s43 = sshll.u32 [#allocation7], 4
      %s44 = int_to_ptr.vmem [resolvable:$true] %s43
      %49 = dma.hbm_to_vmem [thread:$0]  %s42, 1536, %s44, [#allocation6], 128, 128, 8
    $region13: #{tpu_custom_call.1} parent=1 // pred_fallthru
      _
    // Predicated region
    $region14: #{tpu_custom_call.1} parent=1 // pred_check
      _
    $region15: #{tpu_custom_call.1} parent=1 // pred_check_branch
      %51 = sbr.rel (0) target = $region17
    $region16: #{tpu_custom_call.1} parent=1 // pred_region
      %53 = dma.done [#allocation3], 1152
    $region17: #{tpu_custom_call.1} parent=1 // pred_fallthru
      _
    // Predicated region
    $region18: #{tpu_custom_call.1} parent=1 // pred_check
      _
    $region19: #{tpu_custom_call.1} parent=1 // pred_check_branch
      %55 = sbr.rel (0) target = $region21
    $region20: #{tpu_custom_call.1} parent=1 // pred_region
      %57 = dma.done [#allocation6], 26112
    $region21: #{tpu_custom_call.1} parent=1 // pred_fallthru
      _
    // Predicated region
    $region22: #{tpu_custom_call.1} parent=1 // pred_check
      _
    $region23: #{tpu_custom_call.1} parent=1 // pred_check_branch
      %59 = sbr.rel (0) target = $region25
    $region24: #{tpu_custom_call.1} parent=1 // pred_region
      %61 = dma.done [#allocation6], 1536
    $region25: #{tpu_custom_call.1} parent=1 // pred_fallthru
      _
    %v63 = vld [vmem:[#allocation2] sm:$0xff]
    %v64 = vld [vmem:[#allocation2 + $0x8] sm:$0xff]
    %v65 = vld [vmem:[#allocation2 + $0x10] sm:$0xff]
    %v66 = vld [vmem:[#allocation2 + $0x18] sm:$0xff]
    %v67 = vld [vmem:[#allocation2 + $0x20] sm:$0xff]
    %v68 = vld [vmem:[#allocation2 + $0x28] sm:$0xff]
    %v69 = vld [vmem:[#allocation2 + $0x30] sm:$0xff]
    %v70 = vld [vmem:[#allocation2 + $0x38] sm:$0xff]
    %v71 = vld [vmem:[#allocation5] sm:$0xff]
    %v72 = vld [vmem:[#allocation5 + $0x8] sm:$0xff]
    %v73 = vld [vmem:[#allocation5 + $0x10] sm:$0xff]
    %v74 = vld [vmem:[#allocation5 + $0x18] sm:$0xff]
    %v75 = vld [vmem:[#allocation5 + $0x20] sm:$0xff]
    %v76 = vld [vmem:[#allocation5 + $0x28] sm:$0xff]
    %v77 = vld [vmem:[#allocation5 + $0x30] sm:$0xff]
    %v78 = vld [vmem:[#allocation5 + $0x38] sm:$0xff]
    %v79 = vld [vmem:[#allocation5 + $0x40] sm:$0xff]
    %v80 = vld [vmem:[#allocation5 + $0x48] sm:$0xff]
    %v81 = vld [vmem:[#allocation5 + $0x50] sm:$0xff]
    %v82 = vld [vmem:[#allocation5 + $0x58] sm:$0xff]
    %v83 = vld [vmem:[#allocation5 + $0x60] sm:$0xff]
    %v84 = vld [vmem:[#allocation5 + $0x68] sm:$0xff]
    %v85 = vld [vmem:[#allocation5 + $0x70] sm:$0xff]
    %v86 = vld [vmem:[#allocation5 + $0x78] sm:$0xff]
    %v87 = vld [vmem:[#allocation5 + $0x80] sm:$0xff]
    %v88 = vld [vmem:[#allocation5 + $0x88] sm:$0xff]
    %v89 = vld [vmem:[#allocation5 + $0x90] sm:$0xff]
    %v90 = vld [vmem:[#allocation5 + $0x98] sm:$0xff]
    %v91 = vld [vmem:[#allocation5 + $0xa0] sm:$0xff]
    %v92 = vld [vmem:[#allocation5 + $0xa8] sm:$0xff]
    %v93 = vld [vmem:[#allocation5 + $0xb0] sm:$0xff]
    %v94 = vld [vmem:[#allocation5 + $0xb8] sm:$0xff]
    %v95 = vld [vmem:[#allocation5 + $0xc0] sm:$0xff]
    %v96 = vld [vmem:[#allocation5 + $0xc8] sm:$0xff]
    %v97 = vld [vmem:[#allocation5 + $0xd0] sm:$0xff]
    %v98 = vld [vmem:[#allocation5 + $0xd8] sm:$0xff]
    %v99 = vld [vmem:[#allocation5 + $0xe0] sm:$0xff]
    %v100 = vld [vmem:[#allocation5 + $0xe8] sm:$0xff]
    %v101 = vld [vmem:[#allocation5 + $0xf0] sm:$0xff]
    %v102 = vld [vmem:[#allocation5 + $0xf8] sm:$0xff]
    %s103 = scalar_lea.vmem [#allocation5], 256
    %v104 = vld [vmem:[%s103] ss:$8 sm:$0x3]
    %v106 = vperm.slane %v104, 0
    %v107 = vperm.slane %v104, 1
    %110 = vmatpush.msra.mxu0 %v101
    %111 = vmatpush.msra.mxu0 %v99
    %112 = vmatpush.msra.mxu0 %v97
    %113 = vmatpush.msra.mxu0 %v95
    %114 = vmatpush.msra.mxu0 %v93
    %115 = vmatpush.msra.mxu0 %v91
    %116 = vmatpush.msra.mxu0 %v89
    %117 = vmatpush.msra.mxu0 %v87
    %118 = vmatpush.msra.mxu0 %v85
    %119 = vmatpush.msra.mxu0 %v83
    %120 = vmatpush.msra.mxu0 %v81
    %121 = vmatpush.msra.mxu0 %v79
    %122 = vmatpush.msra.mxu0 %v77
    %123 = vmatpush.msra.mxu0 %v75
    %124 = vmatpush.msra.mxu0 %v73
    %125 = vmatpush.msra.mxu0 %v71
    %126 = vmatmul.f32.gmra.mxu0 %v63
    %v127 = vpop.f32.mrf.mxu0
    %v128 = vadd.f32 %v106, %v127
    %129 = vmatmul.f32.gmra.mxu0 %v64
    %v130 = vpop.f32.mrf.mxu0
    %v131 = vadd.f32 %v106, %v130
    %132 = vmatmul.f32.gmra.mxu0 %v65
    %v133 = vpop.f32.mrf.mxu0
    %v134 = vadd.f32 %v106, %v133
    %135 = vmatmul.f32.gmra.mxu0 %v66
    %v136 = vpop.f32.mrf.mxu0
    %v137 = vadd.f32 %v106, %v136
    %138 = vmatmul.f32.gmra.mxu0 %v67
    %v139 = vpop.f32.mrf.mxu0
    %v140 = vadd.f32 %v106, %v139
    %141 = vmatmul.f32.gmra.mxu0 %v68
    %v142 = vpop.f32.mrf.mxu0
    %v143 = vadd.f32 %v106, %v142
    %144 = vmatmul.f32.gmra.mxu0 %v69
    %v145 = vpop.f32.mrf.mxu0
    %v146 = vadd.f32 %v106, %v145
    %147 = vmatmul.f32.gmra.mxu0 %v70
    %v148 = vpop.f32.mrf.mxu0
    %v149 = vadd.f32 %v106, %v148
    %150 = vdwg.mxu0
    %151 = vmatpush.msra.mxu0 %v102
    %152 = vmatpush.msra.mxu0 %v100
    %153 = vmatpush.msra.mxu0 %v98
    %154 = vmatpush.msra.mxu0 %v96
    %155 = vmatpush.msra.mxu0 %v94
    %156 = vmatpush.msra.mxu0 %v92
    %157 = vmatpush.msra.mxu0 %v90
    %158 = vmatpush.msra.mxu0 %v88
    %159 = vmatpush.msra.mxu0 %v86
    %160 = vmatpush.msra.mxu0 %v84
    %161 = vmatpush.msra.mxu0 %v82
    %162 = vmatpush.msra.mxu0 %v80
    %163 = vmatpush.msra.mxu0 %v78
    %164 = vmatpush.msra.mxu0 %v76
    %165 = vmatpush.msra.mxu0 %v74
    %166 = vmatpush.msra.mxu0 %v72
    %167 = vmatmul.f32.gmra.mxu0 %v63
    %v168 = vpop.f32.mrf.mxu0
    %v169 = vadd.f32 %v107, %v168
    %170 = vmatmul.f32.gmra.mxu0 %v64
    %v171 = vpop.f32.mrf.mxu0
    %v172 = vadd.f32 %v107, %v171
    %173 = vmatmul.f32.gmra.mxu0 %v65
    %v174 = vpop.f32.mrf.mxu0
    %v175 = vadd.f32 %v107, %v174
    %176 = vmatmul.f32.gmra.mxu0 %v66
    %v177 = vpop.f32.mrf.mxu0
    %v178 = vadd.f32 %v107, %v177
    %179 = vmatmul.f32.gmra.mxu0 %v67
    %v180 = vpop.f32.mrf.mxu0
    %v181 = vadd.f32 %v107, %v180
    %182 = vmatmul.f32.gmra.mxu0 %v68
    %v183 = vpop.f32.mrf.mxu0
    %v184 = vadd.f32 %v107, %v183
    %185 = vmatmul.f32.gmra.mxu0 %v69
    %v186 = vpop.f32.mrf.mxu0
    %v187 = vadd.f32 %v107, %v186
    %188 = vmatmul.f32.gmra.mxu0 %v70
    %v189 = vpop.f32.mrf.mxu0
    %v190 = vadd.f32 %v107, %v189
    %191 = vdwg.mxu0
    %v192 = vld [vmem:[#allocation7] sm:$0xff]
    %v193 = vld [vmem:[#allocation7 + $0x8] sm:$0xff]
    %v194 = vld [vmem:[#allocation7 + $0x10] sm:$0xff]
    %v195 = vld [vmem:[#allocation7 + $0x18] sm:$0xff]
    %v196 = vld [vmem:[#allocation7 + $0x20] sm:$0xff]
    %v197 = vld [vmem:[#allocation7 + $0x28] sm:$0xff]
    %v198 = vld [vmem:[#allocation7 + $0x30] sm:$0xff]
    %v199 = vld [vmem:[#allocation7 + $0x38] sm:$0xff]
    %v208 = vunpack.c.l.b16 %v192
    %v209 = vunpack.c.h.b16 %v192
    %v210 = vunpack.c.l.b16 %v193
    %v211 = vunpack.c.h.b16 %v193
    %v212 = vunpack.c.l.b16 %v194
    %v213 = vunpack.c.h.b16 %v194
    %v214 = vunpack.c.l.b16 %v195
    %v215 = vunpack.c.h.b16 %v195
    %v216 = vunpack.c.l.b16 %v196
    %v217 = vunpack.c.h.b16 %v196
    %v218 = vunpack.c.l.b16 %v197
    %v219 = vunpack.c.h.b16 %v197
    %v220 = vunpack.c.l.b16 %v198
    %v221 = vunpack.c.h.b16 %v198
    %v222 = vunpack.c.l.b16 %v199
    %v223 = vunpack.c.h.b16 %v199
    %v224 = vpack.c.b16 %v210, %v208
    %v225 = vpack.c.b16 %v211, %v209
    %v226 = vpack.c.b16 %v214, %v212
    %v227 = vpack.c.b16 %v215, %v213
    %v228 = vpack.c.b16 %v218, %v216
    %v229 = vpack.c.b16 %v219, %v217
    %v230 = vpack.c.b16 %v222, %v220
    %v231 = vpack.c.b16 %v223, %v221
    %vm240 = vcmask 523264
    %v242 = vsel %vm240, 0, 0
    %244 = vmatpush.bf16.msra.mxu0 0
    %245 = vmatpush.bf16.msra.mxu0 0
    %246 = vmatpush.bf16.msra.mxu0 0
    %247 = vmatpush.bf16.msra.mxu0 0
    %248 = vmatpush.bf16.msra.mxu0 %v230
    %249 = vmatpush.bf16.msra.mxu0 %v228
    %250 = vmatpush.bf16.msra.mxu0 %v226
    %251 = vmatpush.bf16.msra.mxu0 %v224
    %252 = vmatmul.bf16.gmra.mxu0 %v242
    %v253 = vpop.f32.mrf.mxu0
    %v254 = vadd.f32 0.0, %v253
    %v255 = vpop.f32.mrf.mxu0
    %256 = vdwg.mxu0
    %257 = vmatpush.bf16.msra.mxu0 0
    %258 = vmatpush.bf16.msra.mxu0 0
    %259 = vmatpush.bf16.msra.mxu0 0
    %260 = vmatpush.bf16.msra.mxu0 0
    %261 = vmatpush.bf16.msra.mxu0 %v231
    %262 = vmatpush.bf16.msra.mxu0 %v229
    %263 = vmatpush.bf16.msra.mxu0 %v227
    %264 = vmatpush.bf16.msra.mxu0 %v225
    %265 = vmatmul.bf16.gmra.mxu0 %v242
    %v266 = vpop.f32.mrf.mxu0
    %v267 = vadd.f32 0.0, %v266
    %v268 = vpop.f32.mrf.mxu0
    %269 = vdwg.mxu0
    %v270 = vadd.f32 %v128, %v254
    %v271 = vadd.f32 %v169, %v267
    %v272 = vxor.u32 %v270, 2147483648
    %v273 = vxor.u32 %v271, 2147483648
    %v274 = vmul.f32 %v272, 1.442695
    %v275 = vpow.pop %v274
    %v276 = vmul.f32 %v273, 1.442695
    %v277 = vpow.pop %v276
    %v278 = vadd.f32 %v275, 1.0
    %v279 = vadd.f32 %v277, 1.0
    %v280 = vrcp.pop %v278
    %v281 = vmul.f32 %v278, %v280
    %v282 = vsub.f32 1.0, %v281
    %v283 = vmul.f32 %v280, %v282
    %v284 = vadd.f32 %v280, %v283
    %vm285 = vweird.f32 %v278
    %vm286 = vweird.f32 %v280
    %vm287 = vmor %vm285, %vm286
    %v288 = vsel %vm287, %v280, %v284
    %v289 = vand.u32 2147483647, %v278
    %vm290 = vcmp.eq.f32.partialorder %v289, 8.507059e+37
    %v291 = vand.u32 %v278, 2147483648
    %v292 = vor.u32 1.1754944e-38, %v291
    %v293 = vsel %vm290, %v292, %v288
    %v294 = vmul.f32 1.0, %v293
    %v295 = vrcp.pop %v279
    %v296 = vmul.f32 %v279, %v295
    %v297 = vsub.f32 1.0, %v296
    %v298 = vmul.f32 %v295, %v297
    %v299 = vadd.f32 %v295, %v298
    %vm300 = vweird.f32 %v279
    %vm301 = vweird.f32 %v295
    %vm302 = vmor %vm300, %vm301
    %v303 = vsel %vm302, %v295, %v299
    %v304 = vand.u32 2147483647, %v279
    %vm305 = vcmp.eq.f32.partialorder %v304, 8.507059e+37
    %v306 = vand.u32 %v279, 2147483648
    %v307 = vor.u32 1.1754944e-38, %v306
    %v308 = vsel %vm305, %v307, %v303
    %v309 = vmul.f32 1.0, %v308
    %v310 = vmul.f32 %v309, 2.0
    %v311 = vsub.f32 %v310, 1.0
    %v312 = vmul.f32 %v294, 0.0
    %v313 = vmul.f32 %v294, %v311
    %315 = vrot.lane.b32.xlu0 %v313, 64
    %v316 = vpop.permute.xlu0 %315
    %v318 = vadd.f32 %v312, %v316
    %v319 = vtanh.pop %v318
    %v320 = vmul.f32 %v309, %v319
    %v321 = vpack.c.bf16 %v320, %v320
    %323 = vrot.lane.b32.xlu0 %v321, 64
    %v324 = vpop.permute.xlu0 %323
    %v326 = vsel %vm240, %v324, 0
    %328 = vmatpush.bf16.msra.mxu0 0
    %329 = vmatpush.bf16.msra.mxu0 0
    %330 = vmatpush.bf16.msra.mxu0 0
    %331 = vmatpush.bf16.msra.mxu0 0
    %332 = vmatpush.bf16.msra.mxu0 %v230
    %333 = vmatpush.bf16.msra.mxu0 %v228
    %334 = vmatpush.bf16.msra.mxu0 %v226
    %335 = vmatpush.bf16.msra.mxu0 %v224
    %336 = vmatmul.bf16.gmra.mxu0 %v326
    %v337 = vpop.f32.mrf.mxu0
    %v338 = vadd.f32 0.0, %v337
    %v339 = vpop.f32.mrf.mxu0
    %340 = vdwg.mxu0
    %341 = vmatpush.bf16.msra.mxu0 0
    %342 = vmatpush.bf16.msra.mxu0 0
    %343 = vmatpush.bf16.msra.mxu0 0
    %344 = vmatpush.bf16.msra.mxu0 0
    %345 = vmatpush.bf16.msra.mxu0 %v231
    %346 = vmatpush.bf16.msra.mxu0 %v229
    %347 = vmatpush.bf16.msra.mxu0 %v227
    %348 = vmatpush.bf16.msra.mxu0 %v225
    %349 = vmatmul.bf16.gmra.mxu0 %v326
    %v350 = vpop.f32.mrf.mxu0
    %v351 = vadd.f32 0.0, %v350
    %v352 = vpop.f32.mrf.mxu0
    %353 = vdwg.mxu0
    %v354 = vadd.f32 %v131, %v338
    %v355 = vadd.f32 %v172, %v351
    %v356 = vxor.u32 %v354, 2147483648
    %v357 = vxor.u32 %v355, 2147483648
    %v358 = vmul.f32 %v356, 1.442695
    %v359 = vpow.pop %v358
    %v360 = vmul.f32 %v357, 1.442695
    %v361 = vpow.pop %v360
    %v362 = vadd.f32 %v359, 1.0
    %v363 = vadd.f32 %v361, 1.0
    %v364 = vrcp.pop %v362
    %v365 = vmul.f32 %v362, %v364
    %v366 = vsub.f32 1.0, %v365
    %v367 = vmul.f32 %v364, %v366
    %v368 = vadd.f32 %v364, %v367
    %vm369 = vweird.f32 %v362
    %vm370 = vweird.f32 %v364
    %vm371 = vmor %vm369, %vm370
    %v372 = vsel %vm371, %v364, %v368
    %v373 = vand.u32 2147483647, %v362
    %vm374 = vcmp.eq.f32.partialorder %v373, 8.507059e+37
    %v375 = vand.u32 %v362, 2147483648
    %v376 = vor.u32 1.1754944e-38, %v375
    %v377 = vsel %vm374, %v376, %v372
    %v378 = vmul.f32 1.0, %v377
    %v379 = vrcp.pop %v363
    %v380 = vmul.f32 %v363, %v379
    %v381 = vsub.f32 1.0, %v380
    %v382 = vmul.f32 %v379, %v381
    %v383 = vadd.f32 %v379, %v382
    %vm384 = vweird.f32 %v363
    %vm385 = vweird.f32 %v379
    %vm386 = vmor %vm384, %vm385
    %v387 = vsel %vm386, %v379, %v383
    %v388 = vand.u32 2147483647, %v363
    %vm389 = vcmp.eq.f32.partialorder %v388, 8.507059e+37
    %v390 = vand.u32 %v363, 2147483648
    %v391 = vor.u32 1.1754944e-38, %v390
    %v392 = vsel %vm389, %v391, %v387
    %v393 = vmul.f32 1.0, %v392
    %v394 = vmul.f32 %v393, 2.0
    %v395 = vsub.f32 %v394, 1.0
    %v396 = vmul.f32 %v378, %v318
    %v397 = vmul.f32 %v378, %v395
    %399 = vrot.lane.b32.xlu0 %v397, 64
    %v400 = vpop.permute.xlu0 %399
    %v402 = vadd.f32 %v396, %v400
    %v403 = vtanh.pop %v402
    %v404 = vmul.f32 %v393, %v403
    %v405 = vpack.c.bf16 %v404, %v404
    %407 = vrot.lane.b32.xlu0 %v405, 64
    %v408 = vpop.permute.xlu0 %407
    %v410 = vsel %vm240, %v408, 0
    %412 = vmatpush.bf16.msra.mxu0 0
    %413 = vmatpush.bf16.msra.mxu0 0
    %414 = vmatpush.bf16.msra.mxu0 0
    %415 = vmatpush.bf16.msra.mxu0 0
    %416 = vmatpush.bf16.msra.mxu0 %v230
    %417 = vmatpush.bf16.msra.mxu0 %v228
    %418 = vmatpush.bf16.msra.mxu0 %v226
    %419 = vmatpush.bf16.msra.mxu0 %v224
    %420 = vmatmul.bf16.gmra.mxu0 %v410
    %v421 = vpop.f32.mrf.mxu0
    %v422 = vadd.f32 0.0, %v421
    %v423 = vpop.f32.mrf.mxu0
    %424 = vdwg.mxu0
    %425 = vmatpush.bf16.msra.mxu0 0
    %426 = vmatpush.bf16.msra.mxu0 0
    %427 = vmatpush.bf16.msra.mxu0 0
    %428 = vmatpush.bf16.msra.mxu0 0
    %429 = vmatpush.bf16.msra.mxu0 %v231
    %430 = vmatpush.bf16.msra.mxu0 %v229
    %431 = vmatpush.bf16.msra.mxu0 %v227
    %432 = vmatpush.bf16.msra.mxu0 %v225
    %433 = vmatmul.bf16.gmra.mxu0 %v410
    %v434 = vpop.f32.mrf.mxu0
    %v435 = vadd.f32 0.0, %v434
    %v436 = vpop.f32.mrf.mxu0
    %437 = vdwg.mxu0
    %v438 = vadd.f32 %v134, %v422
    %v439 = vadd.f32 %v175, %v435
    %v440 = vxor.u32 %v438, 2147483648
    %v441 = vxor.u32 %v439, 2147483648
    %v442 = vmul.f32 %v440, 1.442695
    %v443 = vpow.pop %v442
    %v444 = vmul.f32 %v441, 1.442695
    %v445 = vpow.pop %v444
    %v446 = vadd.f32 %v443, 1.0
    %v447 = vadd.f32 %v445, 1.0
    %v448 = vrcp.pop %v446
    %v449 = vmul.f32 %v446, %v448
    %v450 = vsub.f32 1.0, %v449
    %v451 = vmul.f32 %v448, %v450
    %v452 = vadd.f32 %v448, %v451
    %vm453 = vweird.f32 %v446
    %vm454 = vweird.f32 %v448
    %vm455 = vmor %vm453, %vm454
    %v456 = vsel %vm455, %v448, %v452
    %v457 = vand.u32 2147483647, %v446
    %vm458 = vcmp.eq.f32.partialorder %v457, 8.507059e+37
    %v459 = vand.u32 %v446, 2147483648
    %v460 = vor.u32 1.1754944e-38, %v459
    %v461 = vsel %vm458, %v460, %v456
    %v462 = vmul.f32 1.0, %v461
    %v463 = vrcp.pop %v447
    %v464 = vmul.f32 %v447, %v463
    %v465 = vsub.f32 1.0, %v464
    %v466 = vmul.f32 %v463, %v465
    %v467 = vadd.f32 %v463, %v466
    %vm468 = vweird.f32 %v447
    %vm469 = vweird.f32 %v463
    %vm470 = vmor %vm468, %vm469
    %v471 = vsel %vm470, %v463, %v467
    %v472 = vand.u32 2147483647, %v447
    %vm473 = vcmp.eq.f32.partialorder %v472, 8.507059e+37
    %v474 = vand.u32 %v447, 2147483648
    %v475 = vor.u32 1.1754944e-38, %v474
    %v476 = vsel %vm473, %v475, %v471
    %v477 = vmul.f32 1.0, %v476
    %v478 = vmul.f32 %v477, 2.0
    %v479 = vsub.f32 %v478, 1.0
    %v480 = vmul.f32 %v462, %v402
    %v481 = vmul.f32 %v462, %v479
    %483 = vrot.lane.b32.xlu0 %v481, 64
    %v484 = vpop.permute.xlu0 %483
    %v486 = vadd.f32 %v480, %v484
    %v487 = vtanh.pop %v486
    %v488 = vmul.f32 %v477, %v487
    %v489 = vpack.c.bf16 %v488, %v488
    %491 = vrot.lane.b32.xlu0 %v489, 64
    %v492 = vpop.permute.xlu0 %491
    %v494 = vsel %vm240, %v492, 0
    %496 = vmatpush.bf16.msra.mxu0 0
    %497 = vmatpush.bf16.msra.mxu0 0
    %498 = vmatpush.bf16.msra.mxu0 0
    %499 = vmatpush.bf16.msra.mxu0 0
    %500 = vmatpush.bf16.msra.mxu0 %v230
    %501 = vmatpush.bf16.msra.mxu0 %v228
    %502 = vmatpush.bf16.msra.mxu0 %v226
    %503 = vmatpush.bf16.msra.mxu0 %v224
    %504 = vmatmul.bf16.gmra.mxu0 %v494
    %v505 = vpop.f32.mrf.mxu0
    %v506 = vadd.f32 0.0, %v505
    %v507 = vpop.f32.mrf.mxu0
    %508 = vdwg.mxu0
    %509 = vmatpush.bf16.msra.mxu0 0
    %510 = vmatpush.bf16.msra.mxu0 0
    %511 = vmatpush.bf16.msra.mxu0 0
    %512 = vmatpush.bf16.msra.mxu0 0
    %513 = vmatpush.bf16.msra.mxu0 %v231
    %514 = vmatpush.bf16.msra.mxu0 %v229
    %515 = vmatpush.bf16.msra.mxu0 %v227
    %516 = vmatpush.bf16.msra.mxu0 %v225
    %517 = vmatmul.bf16.gmra.mxu0 %v494
    %v518 = vpop.f32.mrf.mxu0
    %v519 = vadd.f32 0.0, %v518
    %v520 = vpop.f32.mrf.mxu0
    %521 = vdwg.mxu0
    %v522 = vadd.f32 %v137, %v506
    %v523 = vadd.f32 %v178, %v519
    %v524 = vxor.u32 %v522, 2147483648
    %v525 = vxor.u32 %v523, 2147483648
    %v526 = vmul.f32 %v524, 1.442695
    %v527 = vpow.pop %v526
    %v528 = vmul.f32 %v525, 1.442695
    %v529 = vpow.pop %v528
    %v530 = vadd.f32 %v527, 1.0
    %v531 = vadd.f32 %v529, 1.0
    %v532 = vrcp.pop %v530
    %v533 = vmul.f32 %v530, %v532
    %v534 = vsub.f32 1.0, %v533
    %v535 = vmul.f32 %v532, %v534
    %v536 = vadd.f32 %v532, %v535
    %vm537 = vweird.f32 %v530
    %vm538 = vweird.f32 %v532
    %vm539 = vmor %vm537, %vm538
    %v540 = vsel %vm539, %v532, %v536
    %v541 = vand.u32 2147483647, %v530
    %vm542 = vcmp.eq.f32.partialorder %v541, 8.507059e+37
    %v543 = vand.u32 %v530, 2147483648
    %v544 = vor.u32 1.1754944e-38, %v543
    %v545 = vsel %vm542, %v544, %v540
    %v546 = vmul.f32 1.0, %v545
    %v547 = vrcp.pop %v531
    %v548 = vmul.f32 %v531, %v547
    %v549 = vsub.f32 1.0, %v548
    %v550 = vmul.f32 %v547, %v549
    %v551 = vadd.f32 %v547, %v550
    %vm552 = vweird.f32 %v531
    %vm553 = vweird.f32 %v547
    %vm554 = vmor %vm552, %vm553
    %v555 = vsel %vm554, %v547, %v551
    %v556 = vand.u32 2147483647, %v531
    %vm557 = vcmp.eq.f32.partialorder %v556, 8.507059e+37
    %v558 = vand.u32 %v531, 2147483648
    %v559 = vor.u32 1.1754944e-38, %v558
    %v560 = vsel %vm557, %v559, %v555
    %v561 = vmul.f32 1.0, %v560
    %v562 = vmul.f32 %v561, 2.0
    %v563 = vsub.f32 %v562, 1.0
    %v564 = vmul.f32 %v546, %v486
    %v565 = vmul.f32 %v546, %v563
    %567 = vrot.lane.b32.xlu0 %v565, 64
    %v568 = vpop.permute.xlu0 %567
    %v570 = vadd.f32 %v564, %v568
    %v571 = vtanh.pop %v570
    %v572 = vmul.f32 %v561, %v571
    %v573 = vpack.c.bf16 %v572, %v572
    %575 = vrot.lane.b32.xlu0 %v573, 64
    %v576 = vpop.permute.xlu0 %575
    %v578 = vsel %vm240, %v576, 0
    %580 = vmatpush.bf16.msra.mxu0 0
    %581 = vmatpush.bf16.msra.mxu0 0
    %582 = vmatpush.bf16.msra.mxu0 0
    %583 = vmatpush.bf16.msra.mxu0 0
    %584 = vmatpush.bf16.msra.mxu0 %v230
    %585 = vmatpush.bf16.msra.mxu0 %v228
    %586 = vmatpush.bf16.msra.mxu0 %v226
    %587 = vmatpush.bf16.msra.mxu0 %v224
    %588 = vmatmul.bf16.gmra.mxu0 %v578
    %v589 = vpop.f32.mrf.mxu0
    %v590 = vadd.f32 0.0, %v589
    %v591 = vpop.f32.mrf.mxu0
    %592 = vdwg.mxu0
    %593 = vmatpush.bf16.msra.mxu0 0
    %594 = vmatpush.bf16.msra.mxu0 0
    %595 = vmatpush.bf16.msra.mxu0 0
    %596 = vmatpush.bf16.msra.mxu0 0
    %597 = vmatpush.bf16.msra.mxu0 %v231
    %598 = vmatpush.bf16.msra.mxu0 %v229
    %599 = vmatpush.bf16.msra.mxu0 %v227
    %600 = vmatpush.bf16.msra.mxu0 %v225
    %601 = vmatmul.bf16.gmra.mxu0 %v578
    %v602 = vpop.f32.mrf.mxu0
    %v603 = vadd.f32 0.0, %v602
    %v604 = vpop.f32.mrf.mxu0
    %605 = vdwg.mxu0
    %v606 = vadd.f32 %v140, %v590
    %v607 = vadd.f32 %v181, %v603
    %v608 = vxor.u32 %v606, 2147483648
    %v609 = vxor.u32 %v607, 2147483648
    %v610 = vmul.f32 %v608, 1.442695
    %v611 = vpow.pop %v610
    %v612 = vmul.f32 %v609, 1.442695
    %v613 = vpow.pop %v612
    %v614 = vadd.f32 %v611, 1.0
    %v615 = vadd.f32 %v613, 1.0
    %v616 = vrcp.pop %v614
    %v617 = vmul.f32 %v614, %v616
    %v618 = vsub.f32 1.0, %v617
    %v619 = vmul.f32 %v616, %v618
    %v620 = vadd.f32 %v616, %v619
    %vm621 = vweird.f32 %v614
    %vm622 = vweird.f32 %v616
    %vm623 = vmor %vm621, %vm622
    %v624 = vsel %vm623, %v616, %v620
    %v625 = vand.u32 2147483647, %v614
    %vm626 = vcmp.eq.f32.partialorder %v625, 8.507059e+37
    %v627 = vand.u32 %v614, 2147483648
    %v628 = vor.u32 1.1754944e-38, %v627
    %v629 = vsel %vm626, %v628, %v624
    %v630 = vmul.f32 1.0, %v629
    %v631 = vrcp.pop %v615
    %v632 = vmul.f32 %v615, %v631
    %v633 = vsub.f32 1.0, %v632
    %v634 = vmul.f32 %v631, %v633
    %v635 = vadd.f32 %v631, %v634
    %vm636 = vweird.f32 %v615
    %vm637 = vweird.f32 %v631
    %vm638 = vmor %vm636, %vm637
    %v639 = vsel %vm638, %v631, %v635
    %v640 = vand.u32 2147483647, %v615
    %vm641 = vcmp.eq.f32.partialorder %v640, 8.507059e+37
    %v642 = vand.u32 %v615, 2147483648
    %v643 = vor.u32 1.1754944e-38, %v642
    %v644 = vsel %vm641, %v643, %v639
    %v645 = vmul.f32 1.0, %v644
    %v646 = vmul.f32 %v645, 2.0
    %v647 = vsub.f32 %v646, 1.0
    %v648 = vmul.f32 %v630, %v570
    %v649 = vmul.f32 %v630, %v647
    %651 = vrot.lane.b32.xlu0 %v649, 64
    %v652 = vpop.permute.xlu0 %651
    %v654 = vadd.f32 %v648, %v652
    %v655 = vtanh.pop %v654
    %v656 = vmul.f32 %v645, %v655
    %v657 = vpack.c.bf16 %v656, %v656
    %659 = vrot.lane.b32.xlu0 %v657, 64
    %v660 = vpop.permute.xlu0 %659
    %v662 = vsel %vm240, %v660, 0
    %664 = vmatpush.bf16.msra.mxu0 0
    %665 = vmatpush.bf16.msra.mxu0 0
    %666 = vmatpush.bf16.msra.mxu0 0
    %667 = vmatpush.bf16.msra.mxu0 0
    %668 = vmatpush.bf16.msra.mxu0 %v230
    %669 = vmatpush.bf16.msra.mxu0 %v228
    %670 = vmatpush.bf16.msra.mxu0 %v226
    %671 = vmatpush.bf16.msra.mxu0 %v224
    %672 = vmatmul.bf16.gmra.mxu0 %v662
    %v673 = vpop.f32.mrf.mxu0
    %v674 = vadd.f32 0.0, %v673
    %v675 = vpop.f32.mrf.mxu0
    %676 = vdwg.mxu0
    %677 = vmatpush.bf16.msra.mxu0 0
    %678 = vmatpush.bf16.msra.mxu0 0
    %679 = vmatpush.bf16.msra.mxu0 0
    %680 = vmatpush.bf16.msra.mxu0 0
    %681 = vmatpush.bf16.msra.mxu0 %v231
    %682 = vmatpush.bf16.msra.mxu0 %v229
    %683 = vmatpush.bf16.msra.mxu0 %v227
    %684 = vmatpush.bf16.msra.mxu0 %v225
    %685 = vmatmul.bf16.gmra.mxu0 %v662
    %v686 = vpop.f32.mrf.mxu0
    %v687 = vadd.f32 0.0, %v686
    %v688 = vpop.f32.mrf.mxu0
    %689 = vdwg.mxu0
    %v690 = vadd.f32 %v143, %v674
    %v691 = vadd.f32 %v184, %v687
    %v692 = vxor.u32 %v690, 2147483648
    %v693 = vxor.u32 %v691, 2147483648
    %v694 = vmul.f32 %v692, 1.442695
    %v695 = vpow.pop %v694
    %v696 = vmul.f32 %v693, 1.442695
    %v697 = vpow.pop %v696
    %v698 = vadd.f32 %v695, 1.0
    %v699 = vadd.f32 %v697, 1.0
    %v700 = vrcp.pop %v698
    %v701 = vmul.f32 %v698, %v700
    %v702 = vsub.f32 1.0, %v701
    %v703 = vmul.f32 %v700, %v702
    %v704 = vadd.f32 %v700, %v703
    %vm705 = vweird.f32 %v698
    %vm706 = vweird.f32 %v700
    %vm707 = vmor %vm705, %vm706
    %v708 = vsel %vm707, %v700, %v704
    %v709 = vand.u32 2147483647, %v698
    %vm710 = vcmp.eq.f32.partialorder %v709, 8.507059e+37
    %v711 = vand.u32 %v698, 2147483648
    %v712 = vor.u32 1.1754944e-38, %v711
    %v713 = vsel %vm710, %v712, %v708
    %v714 = vmul.f32 1.0, %v713
    %v715 = vrcp.pop %v699
    %v716 = vmul.f32 %v699, %v715
    %v717 = vsub.f32 1.0, %v716
    %v718 = vmul.f32 %v715, %v717
    %v719 = vadd.f32 %v715, %v718
    %vm720 = vweird.f32 %v699
    %vm721 = vweird.f32 %v715
    %vm722 = vmor %vm720, %vm721
    %v723 = vsel %vm722, %v715, %v719
    %v724 = vand.u32 2147483647, %v699
    %vm725 = vcmp.eq.f32.partialorder %v724, 8.507059e+37
    %v726 = vand.u32 %v699, 2147483648
    %v727 = vor.u32 1.1754944e-38, %v726
    %v728 = vsel %vm725, %v727, %v723
    %v729 = vmul.f32 1.0, %v728
    %v730 = vmul.f32 %v729, 2.0
    %v731 = vsub.f32 %v730, 1.0
    %v732 = vmul.f32 %v714, %v654
    %v733 = vmul.f32 %v714, %v731
    %735 = vrot.lane.b32.xlu0 %v733, 64
    %v736 = vpop.permute.xlu0 %735
    %v738 = vadd.f32 %v732, %v736
    %v739 = vtanh.pop %v738
    %v740 = vmul.f32 %v729, %v739
    %v741 = vpack.c.bf16 %v740, %v740
    %743 = vrot.lane.b32.xlu0 %v741, 64
    %v744 = vpop.permute.xlu0 %743
    %v746 = vsel %vm240, %v744, 0
    %748 = vmatpush.bf16.msra.mxu0 0
    %749 = vmatpush.bf16.msra.mxu0 0
    %750 = vmatpush.bf16.msra.mxu0 0
    %751 = vmatpush.bf16.msra.mxu0 0
    %752 = vmatpush.bf16.msra.mxu0 %v230
    %753 = vmatpush.bf16.msra.mxu0 %v228
    %754 = vmatpush.bf16.msra.mxu0 %v226
    %755 = vmatpush.bf16.msra.mxu0 %v224
    %756 = vmatmul.bf16.gmra.mxu0 %v746
    %v757 = vpop.f32.mrf.mxu0
    %v758 = vadd.f32 0.0, %v757
    %v759 = vpop.f32.mrf.mxu0
    %760 = vdwg.mxu0
    %761 = vmatpush.bf16.msra.mxu0 0
    %762 = vmatpush.bf16.msra.mxu0 0
    %763 = vmatpush.bf16.msra.mxu0 0
    %764 = vmatpush.bf16.msra.mxu0 0
    %765 = vmatpush.bf16.msra.mxu0 %v231
    %766 = vmatpush.bf16.msra.mxu0 %v229
    %767 = vmatpush.bf16.msra.mxu0 %v227
    %768 = vmatpush.bf16.msra.mxu0 %v225
    %769 = vmatmul.bf16.gmra.mxu0 %v746
    %v770 = vpop.f32.mrf.mxu0
    %v771 = vadd.f32 0.0, %v770
    %v772 = vpop.f32.mrf.mxu0
    %773 = vdwg.mxu0
    %v774 = vadd.f32 %v146, %v758
    %v775 = vadd.f32 %v187, %v771
    %v776 = vxor.u32 %v774, 2147483648
    %v777 = vxor.u32 %v775, 2147483648
    %v778 = vmul.f32 %v776, 1.442695
    %v779 = vpow.pop %v778
    %v780 = vmul.f32 %v777, 1.442695
    %v781 = vpow.pop %v780
    %v782 = vadd.f32 %v779, 1.0
    %v783 = vadd.f32 %v781, 1.0
    %v784 = vrcp.pop %v782
    %v785 = vmul.f32 %v782, %v784
    %v786 = vsub.f32 1.0, %v785
    %v787 = vmul.f32 %v784, %v786
    %v788 = vadd.f32 %v784, %v787
    %vm789 = vweird.f32 %v782
    %vm790 = vweird.f32 %v784
    %vm791 = vmor %vm789, %vm790
    %v792 = vsel %vm791, %v784, %v788
    %v793 = vand.u32 2147483647, %v782
    %vm794 = vcmp.eq.f32.partialorder %v793, 8.507059e+37
    %v795 = vand.u32 %v782, 2147483648
    %v796 = vor.u32 1.1754944e-38, %v795
    %v797 = vsel %vm794, %v796, %v792
    %v798 = vmul.f32 1.0, %v797
    %v799 = vrcp.pop %v783
    %v800 = vmul.f32 %v783, %v799
    %v801 = vsub.f32 1.0, %v800
    %v802 = vmul.f32 %v799, %v801
    %v803 = vadd.f32 %v799, %v802
    %vm804 = vweird.f32 %v783
    %vm805 = vweird.f32 %v799
    %vm806 = vmor %vm804, %vm805
    %v807 = vsel %vm806, %v799, %v803
    %v808 = vand.u32 2147483647, %v783
    %vm809 = vcmp.eq.f32.partialorder %v808, 8.507059e+37
    %v810 = vand.u32 %v783, 2147483648
    %v811 = vor.u32 1.1754944e-38, %v810
    %v812 = vsel %vm809, %v811, %v807
    %v813 = vmul.f32 1.0, %v812
    %v814 = vmul.f32 %v813, 2.0
    %v815 = vsub.f32 %v814, 1.0
    %v816 = vmul.f32 %v798, %v738
    %v817 = vmul.f32 %v798, %v815
    %819 = vrot.lane.b32.xlu0 %v817, 64
    %v820 = vpop.permute.xlu0 %819
    %v822 = vadd.f32 %v816, %v820
    %v823 = vtanh.pop %v822
    %v824 = vmul.f32 %v813, %v823
    %v825 = vpack.c.bf16 %v824, %v824
    %827 = vrot.lane.b32.xlu0 %v825, 64
    %v828 = vpop.permute.xlu0 %827
    %v830 = vsel %vm240, %v828, 0
    %832 = vmatpush.bf16.msra.mxu0 0
    %833 = vmatpush.bf16.msra.mxu0 0
    %834 = vmatpush.bf16.msra.mxu0 0
    %835 = vmatpush.bf16.msra.mxu0 0
    %836 = vmatpush.bf16.msra.mxu0 %v230
    %837 = vmatpush.bf16.msra.mxu0 %v228
    %838 = vmatpush.bf16.msra.mxu0 %v226
    %839 = vmatpush.bf16.msra.mxu0 %v224
    %840 = vmatmul.bf16.gmra.mxu0 %v830
    %v841 = vpop.f32.mrf.mxu0
    %v842 = vadd.f32 0.0, %v841
    %v843 = vpop.f32.mrf.mxu0
    %844 = vdwg.mxu0
    %845 = vmatpush.bf16.msra.mxu0 0
    %846 = vmatpush.bf16.msra.mxu0 0
    %847 = vmatpush.bf16.msra.mxu0 0
    %848 = vmatpush.bf16.msra.mxu0 0
    %849 = vmatpush.bf16.msra.mxu0 %v231
    %850 = vmatpush.bf16.msra.mxu0 %v229
    %851 = vmatpush.bf16.msra.mxu0 %v227
    %852 = vmatpush.bf16.msra.mxu0 %v225
    %853 = vmatmul.bf16.gmra.mxu0 %v830
    %v854 = vpop.f32.mrf.mxu0
    %v855 = vadd.f32 0.0, %v854
    %v856 = vpop.f32.mrf.mxu0
    %857 = vdwg.mxu0
    %v858 = vadd.f32 %v149, %v842
    %v859 = vadd.f32 %v190, %v855
    %v860 = vxor.u32 %v858, 2147483648
    %v861 = vxor.u32 %v859, 2147483648
    %v862 = vmul.f32 %v860, 1.442695
    %v863 = vpow.pop %v862
    %v864 = vmul.f32 %v861, 1.442695
    %v865 = vpow.pop %v864
    %v866 = vadd.f32 %v863, 1.0
    %v867 = vadd.f32 %v865, 1.0
    %v868 = vrcp.pop %v866
    %v869 = vmul.f32 %v866, %v868
    %v870 = vsub.f32 1.0, %v869
    %v871 = vmul.f32 %v868, %v870
    %v872 = vadd.f32 %v868, %v871
    %vm873 = vweird.f32 %v866
    %vm874 = vweird.f32 %v868
    %vm875 = vmor %vm873, %vm874
    %v876 = vsel %vm875, %v868, %v872
    %v877 = vand.u32 2147483647, %v866
    %vm878 = vcmp.eq.f32.partialorder %v877, 8.507059e+37
    %v879 = vand.u32 %v866, 2147483648
    %v880 = vor.u32 1.1754944e-38, %v879
    %v881 = vsel %vm878, %v880, %v876
    %v882 = vmul.f32 1.0, %v881
    %v883 = vrcp.pop %v867
    %v884 = vmul.f32 %v867, %v883
    %v885 = vsub.f32 1.0, %v884
    %v886 = vmul.f32 %v883, %v885
    %v887 = vadd.f32 %v883, %v886
    %vm888 = vweird.f32 %v867
    %vm889 = vweird.f32 %v883
    %vm890 = vmor %vm888, %vm889
    %v891 = vsel %vm890, %v883, %v887
    %v892 = vand.u32 2147483647, %v867
    %vm893 = vcmp.eq.f32.partialorder %v892, 8.507059e+37
    %v894 = vand.u32 %v867, 2147483648
    %v895 = vor.u32 1.1754944e-38, %v894
    %v896 = vsel %vm893, %v895, %v891
    %v897 = vmul.f32 1.0, %v896
    %v898 = vmul.f32 %v897, 2.0
    %v899 = vsub.f32 %v898, 1.0
    %v900 = vmul.f32 %v882, %v822
    %v901 = vmul.f32 %v882, %v899
    %903 = vrot.lane.b32.xlu0 %v901, 64
    %v904 = vpop.permute.xlu0 %903
    %v906 = vadd.f32 %v900, %v904
    %v907 = vtanh.pop %v906
    %v908 = vmul.f32 %v897, %v907
    %v909 = vld [vmem:[#allocation5 + $0x110] sm:$0xff]
    %v910 = vld [vmem:[#allocation5 + $0x118] sm:$0xff]
    %v911 = vld [vmem:[#allocation5 + $0x120] sm:$0xff]
    %v912 = vld [vmem:[#allocation5 + $0x128] sm:$0xff]
    %v913 = vld [vmem:[#allocation5 + $0x130] sm:$0xff]
    %v914 = vld [vmem:[#allocation5 + $0x138] sm:$0xff]
    %v915 = vld [vmem:[#allocation5 + $0x140] sm:$0xff]
    %v916 = vld [vmem:[#allocation5 + $0x148] sm:$0xff]
    %v917 = vld [vmem:[#allocation5 + $0x150] sm:$0xff]
    %v918 = vld [vmem:[#allocation5 + $0x158] sm:$0xff]
    %v919 = vld [vmem:[#allocation5 + $0x160] sm:$0xff]
    %v920 = vld [vmem:[#allocation5 + $0x168] sm:$0xff]
    %v921 = vld [vmem:[#allocation5 + $0x170] sm:$0xff]
    %v922 = vld [vmem:[#allocation5 + $0x178] sm:$0xff]
    %v923 = vld [vmem:[#allocation5 + $0x180] sm:$0xff]
    %v924 = vld [vmem:[#allocation5 + $0x188] sm:$0xff]
    %933 = vrot.lane.b32.xlu0 %v320, 64
    %v934 = vpop.permute.xlu0 %933
    %935 = vrot.lane.b32.xlu0 %v404, 64
    %v936 = vpop.permute.xlu0 %935
    %937 = vrot.lane.b32.xlu0 %v488, 64
    %v938 = vpop.permute.xlu0 %937
    %939 = vrot.lane.b32.xlu0 %v572, 64
    %v940 = vpop.permute.xlu0 %939
    %941 = vrot.lane.b32.xlu0 %v656, 64
    %v942 = vpop.permute.xlu0 %941
    %943 = vrot.lane.b32.xlu0 %v740, 64
    %v944 = vpop.permute.xlu0 %943
    %945 = vrot.lane.b32.xlu0 %v824, 64
    %v946 = vpop.permute.xlu0 %945
    %947 = vrot.lane.b32.xlu0 %v908, 64
    %v948 = vpop.permute.xlu0 %947
    %v949 = vsel %vm240, %v934, 0
    %v951 = vsel %vm240, %v936, 0
    %v953 = vsel %vm240, %v938, 0
    %v955 = vsel %vm240, %v940, 0
    %v957 = vsel %vm240, %v942, 0
    %v959 = vsel %vm240, %v944, 0
    %v961 = vsel %vm240, %v946, 0
    %v963 = vsel %vm240, %v948, 0
    %965 = vmatpush.msra.mxu0 0.0
    %966 = vmatpush.msra.mxu0 0.0
    %967 = vmatpush.msra.mxu0 0.0
    %968 = vmatpush.msra.mxu0 0.0
    %969 = vmatpush.msra.mxu0 0.0
    %970 = vmatpush.msra.mxu0 0.0
    %971 = vmatpush.msra.mxu0 0.0
    %972 = vmatpush.msra.mxu0 0.0
    %973 = vmatpush.msra.mxu0 %v923
    %974 = vmatpush.msra.mxu0 %v921
    %975 = vmatpush.msra.mxu0 %v919
    %976 = vmatpush.msra.mxu0 %v917
    %977 = vmatpush.msra.mxu0 %v915
    %978 = vmatpush.msra.mxu0 %v913
    %979 = vmatpush.msra.mxu0 %v911
    %980 = vmatpush.msra.mxu0 %v909
    %981 = vmatmul.f32.gmra.mxu0 %v949
    %v982 = vpop.f32.mrf.mxu0
    %v983 = vadd.f32 0.0, %v982
    %984 = vmatmul.f32.gmra.mxu0 %v951
    %v985 = vpop.f32.mrf.mxu0
    %v986 = vadd.f32 0.0, %v985
    %987 = vmatmul.f32.gmra.mxu0 %v953
    %v988 = vpop.f32.mrf.mxu0
    %v989 = vadd.f32 0.0, %v988
    %990 = vmatmul.f32.gmra.mxu0 %v955
    %v991 = vpop.f32.mrf.mxu0
    %v992 = vadd.f32 0.0, %v991
    %993 = vmatmul.f32.gmra.mxu0 %v957
    %v994 = vpop.f32.mrf.mxu0
    %v995 = vadd.f32 0.0, %v994
    %996 = vmatmul.f32.gmra.mxu0 %v959
    %v997 = vpop.f32.mrf.mxu0
    %v998 = vadd.f32 0.0, %v997
    %999 = vmatmul.f32.gmra.mxu0 %v961
    %v1000 = vpop.f32.mrf.mxu0
    %v1001 = vadd.f32 0.0, %v1000
    %1002 = vmatmul.f32.gmra.mxu0 %v963
    %v1003 = vpop.f32.mrf.mxu0
    %v1004 = vadd.f32 0.0, %v1003
    %1005 = vdwg.mxu0
    %1006 = vmatpush.msra.mxu0 0.0
    %1007 = vmatpush.msra.mxu0 0.0
    %1008 = vmatpush.msra.mxu0 0.0
    %1009 = vmatpush.msra.mxu0 0.0
    %1010 = vmatpush.msra.mxu0 0.0
    %1011 = vmatpush.msra.mxu0 0.0
    %1012 = vmatpush.msra.mxu0 0.0
    %1013 = vmatpush.msra.mxu0 0.0
    %1014 = vmatpush.msra.mxu0 %v924
    %1015 = vmatpush.msra.mxu0 %v922
    %1016 = vmatpush.msra.mxu0 %v920
    %1017 = vmatpush.msra.mxu0 %v918
    %1018 = vmatpush.msra.mxu0 %v916
    %1019 = vmatpush.msra.mxu0 %v914
    %1020 = vmatpush.msra.mxu0 %v912
    %1021 = vmatpush.msra.mxu0 %v910
    %1022 = vmatmul.f32.gmra.mxu0 %v949
    %v1023 = vpop.f32.mrf.mxu0
    %v1024 = vadd.f32 0.0, %v1023
    %1025 = vmatmul.f32.gmra.mxu0 %v951
    %v1026 = vpop.f32.mrf.mxu0
    %v1027 = vadd.f32 0.0, %v1026
    %1028 = vmatmul.f32.gmra.mxu0 %v953
    %v1029 = vpop.f32.mrf.mxu0
    %v1030 = vadd.f32 0.0, %v1029
    %1031 = vmatmul.f32.gmra.mxu0 %v955
    %v1032 = vpop.f32.mrf.mxu0
    %v1033 = vadd.f32 0.0, %v1032
    %1034 = vmatmul.f32.gmra.mxu0 %v957
    %v1035 = vpop.f32.mrf.mxu0
    %v1036 = vadd.f32 0.0, %v1035
    %1037 = vmatmul.f32.gmra.mxu0 %v959
    %v1038 = vpop.f32.mrf.mxu0
    %v1039 = vadd.f32 0.0, %v1038
    %1040 = vmatmul.f32.gmra.mxu0 %v961
    %v1041 = vpop.f32.mrf.mxu0
    %v1042 = vadd.f32 0.0, %v1041
    %1043 = vmatmul.f32.gmra.mxu0 %v963
    %v1044 = vpop.f32.mrf.mxu0
    %v1045 = vadd.f32 0.0, %v1044
    %1046 = vdwg.mxu0
    %v1047 = vld [vmem:[#allocation5 + $0x190] ss:$0 sm:$0xff]
    %v1048 = vadd.f32 %v983, %v1045
    %v1049 = vadd.f32 %v1048, %v1047
    %v1050 = vld [vmem:[#allocation7 + $0x40] sm:$0xf]
    %v1051 = vld [vmem:[#allocation7 + $0x48] sm:$0xf]
    %v1052 = vld [vmem:[#allocation7 + $0x50] sm:$0xf]
    %v1053 = vld [vmem:[#allocation7 + $0x58] sm:$0xf]
    %v1058 = vunpack.c.l.b16 %v1050
    %v1059 = vunpack.c.l.b16 %v1051
    %v1060 = vunpack.c.l.b16 %v1052
    %v1061 = vunpack.c.l.b16 %v1053
    %v1062 = vpack.c.b16 %v1059, %v1058
    %v1063 = vpack.c.b16 %v1061, %v1060
    %vm1066 = vcmask 261120
    %v1067 = vsel %vm1066, 0, 0
    %1069 = vmatpush.bf16.msra.mxu0 0
    %1070 = vmatpush.bf16.msra.mxu0 0
    %1071 = vmatpush.bf16.msra.mxu0 0
    %1072 = vmatpush.bf16.msra.mxu0 0
    %1073 = vmatpush.bf16.msra.mxu0 0
    %1074 = vmatpush.bf16.msra.mxu0 0
    %1075 = vmatpush.bf16.msra.mxu0 %v1063
    %1076 = vmatpush.bf16.msra.mxu0 %v1062
    %1077 = vmatmul.bf16.gmra.mxu0 %v1067
    %v1078 = vpop.f32.mrf.mxu0
    %v1079 = vadd.f32 0.0, %v1078
    %v1080 = vpop.f32.mrf.mxu0
    %1081 = vdwg.mxu0
    %v1082 = vadd.f32 %v1049, %v1079
    %v1083 = vxor.u32 %v1082, 2147483648
    %v1084 = vmul.f32 %v1083, 1.442695
    %v1085 = vpow.pop %v1084
    %v1086 = vadd.f32 %v1085, 1.0
    %v1087 = vrcp.pop %v1086
    %v1088 = vmul.f32 %v1086, %v1087
    %v1089 = vsub.f32 1.0, %v1088
    %v1090 = vmul.f32 %v1087, %v1089
    %v1091 = vadd.f32 %v1087, %v1090
    %vm1092 = vweird.f32 %v1086
    %vm1093 = vweird.f32 %v1087
    %vm1094 = vmor %vm1092, %vm1093
    %v1095 = vsel %vm1094, %v1087, %v1091
    %v1096 = vand.u32 2147483647, %v1086
    %vm1097 = vcmp.eq.f32.partialorder %v1096, 8.507059e+37
    %v1098 = vand.u32 %v1086, 2147483648
    %v1099 = vor.u32 1.1754944e-38, %v1098
    %v1100 = vsel %vm1097, %v1099, %v1095
    %v1101 = vmul.f32 1.0, %v1100
    %v1102 = vmul.f32 %v1101, 0.0
    %v1103 = vmul.f32 %v1101, 2.0
    %v1104 = vsub.f32 %v1103, 1.0
    %1106 = vrot.lane.b32.xlu0 %v1104, 64
    %v1107 = vpop.permute.xlu0 %1106
    %v1109 = vmul.f32 %v1101, %v1107
    %1111 = vrot.lane.b32.xlu0 %v1109, 32
    %v1112 = vpop.permute.xlu0 %1111
    %v1114 = vadd.f32 %v1102, %v1112
    %v1115 = vtanh.pop %v1114
    %1117 = vrot.lane.b32.xlu0 %v1115, 64
    %v1118 = vpop.permute.xlu0 %1117
    %v1120 = vmul.f32 %v1101, %v1118
    %v1121 = vadd.f32 %v986, %v1042
    %v1122 = vadd.f32 %v1121, %v1047
    %v1123 = vpack.c.bf16 %v1120, %v1120
    %1125 = vrot.lane.b32.xlu0 %v1123, 32
    %v1126 = vpop.permute.xlu0 %1125
    %v1128 = vsel %vm1066, %v1126, 0
    %1130 = vmatpush.bf16.msra.mxu0 0
    %1131 = vmatpush.bf16.msra.mxu0 0
    %1132 = vmatpush.bf16.msra.mxu0 0
    %1133 = vmatpush.bf16.msra.mxu0 0
    %1134 = vmatpush.bf16.msra.mxu0 0
    %1135 = vmatpush.bf16.msra.mxu0 0
    %1136 = vmatpush.bf16.msra.mxu0 %v1063
    %1137 = vmatpush.bf16.msra.mxu0 %v1062
    %1138 = vmatmul.bf16.gmra.mxu0 %v1128
    %v1139 = vpop.f32.mrf.mxu0
    %v1140 = vadd.f32 0.0, %v1139
    %v1141 = vpop.f32.mrf.mxu0
    %1142 = vdwg.mxu0
    %v1143 = vadd.f32 %v1122, %v1140
    %v1144 = vxor.u32 %v1143, 2147483648
    %v1145 = vmul.f32 %v1144, 1.442695
    %v1146 = vpow.pop %v1145
    %v1147 = vadd.f32 %v1146, 1.0
    %v1148 = vrcp.pop %v1147
    %v1149 = vmul.f32 %v1147, %v1148
    %v1150 = vsub.f32 1.0, %v1149
    %v1151 = vmul.f32 %v1148, %v1150
    %v1152 = vadd.f32 %v1148, %v1151
    %vm1153 = vweird.f32 %v1147
    %vm1154 = vweird.f32 %v1148
    %vm1155 = vmor %vm1153, %vm1154
    %v1156 = vsel %vm1155, %v1148, %v1152
    %v1157 = vand.u32 2147483647, %v1147
    %vm1158 = vcmp.eq.f32.partialorder %v1157, 8.507059e+37
    %v1159 = vand.u32 %v1147, 2147483648
    %v1160 = vor.u32 1.1754944e-38, %v1159
    %v1161 = vsel %vm1158, %v1160, %v1156
    %v1162 = vmul.f32 1.0, %v1161
    %v1163 = vmul.f32 %v1162, %v1114
    %v1164 = vmul.f32 %v1162, 2.0
    %v1165 = vsub.f32 %v1164, 1.0
    %1167 = vrot.lane.b32.xlu0 %v1165, 64
    %v1168 = vpop.permute.xlu0 %1167
    %v1170 = vmul.f32 %v1162, %v1168
    %1172 = vrot.lane.b32.xlu0 %v1170, 32
    %v1173 = vpop.permute.xlu0 %1172
    %v1175 = vadd.f32 %v1163, %v1173
    %v1176 = vtanh.pop %v1175
    %1178 = vrot.lane.b32.xlu0 %v1176, 64
    %v1179 = vpop.permute.xlu0 %1178
    %v1181 = vmul.f32 %v1162, %v1179
    %v1182 = vadd.f32 %v989, %v1039
    %v1183 = vadd.f32 %v1182, %v1047
    %v1184 = vpack.c.bf16 %v1181, %v1181
    %1186 = vrot.lane.b32.xlu0 %v1184, 32
    %v1187 = vpop.permute.xlu0 %1186
    %v1189 = vsel %vm1066, %v1187, 0
    %1191 = vmatpush.bf16.msra.mxu0 0
    %1192 = vmatpush.bf16.msra.mxu0 0
    %1193 = vmatpush.bf16.msra.mxu0 0
    %1194 = vmatpush.bf16.msra.mxu0 0
    %1195 = vmatpush.bf16.msra.mxu0 0
    %1196 = vmatpush.bf16.msra.mxu0 0
    %1197 = vmatpush.bf16.msra.mxu0 %v1063
    %1198 = vmatpush.bf16.msra.mxu0 %v1062
    %1199 = vmatmul.bf16.gmra.mxu0 %v1189
    %v1200 = vpop.f32.mrf.mxu0
    %v1201 = vadd.f32 0.0, %v1200
    %v1202 = vpop.f32.mrf.mxu0
    %1203 = vdwg.mxu0
    %v1204 = vadd.f32 %v1183, %v1201
    %v1205 = vxor.u32 %v1204, 2147483648
    %v1206 = vmul.f32 %v1205, 1.442695
    %v1207 = vpow.pop %v1206
    %v1208 = vadd.f32 %v1207, 1.0
    %v1209 = vrcp.pop %v1208
    %v1210 = vmul.f32 %v1208, %v1209
    %v1211 = vsub.f32 1.0, %v1210
    %v1212 = vmul.f32 %v1209, %v1211
    %v1213 = vadd.f32 %v1209, %v1212
    %vm1214 = vweird.f32 %v1208
    %vm1215 = vweird.f32 %v1209
    %vm1216 = vmor %vm1214, %vm1215
    %v1217 = vsel %vm1216, %v1209, %v1213
    %v1218 = vand.u32 2147483647, %v1208
    %vm1219 = vcmp.eq.f32.partialorder %v1218, 8.507059e+37
    %v1220 = vand.u32 %v1208, 2147483648
    %v1221 = vor.u32 1.1754944e-38, %v1220
    %v1222 = vsel %vm1219, %v1221, %v1217
    %v1223 = vmul.f32 1.0, %v1222
    %v1224 = vmul.f32 %v1223, %v1175
    %v1225 = vmul.f32 %v1223, 2.0
    %v1226 = vsub.f32 %v1225, 1.0
    %1228 = vrot.lane.b32.xlu0 %v1226, 64
    %v1229 = vpop.permute.xlu0 %1228
    %v1231 = vmul.f32 %v1223, %v1229
    %1233 = vrot.lane.b32.xlu0 %v1231, 32
    %v1234 = vpop.permute.xlu0 %1233
    %v1236 = vadd.f32 %v1224, %v1234
    %v1237 = vtanh.pop %v1236
    %1239 = vrot.lane.b32.xlu0 %v1237, 64
    %v1240 = vpop.permute.xlu0 %1239
    %v1242 = vmul.f32 %v1223, %v1240
    %v1243 = vadd.f32 %v992, %v1036
    %v1244 = vadd.f32 %v1243, %v1047
    %v1245 = vpack.c.bf16 %v1242, %v1242
    %1247 = vrot.lane.b32.xlu0 %v1245, 32
    %v1248 = vpop.permute.xlu0 %1247
    %v1250 = vsel %vm1066, %v1248, 0
    %1252 = vmatpush.bf16.msra.mxu0 0
    %1253 = vmatpush.bf16.msra.mxu0 0
    %1254 = vmatpush.bf16.msra.mxu0 0
    %1255 = vmatpush.bf16.msra.mxu0 0
    %1256 = vmatpush.bf16.msra.mxu0 0
    %1257 = vmatpush.bf16.msra.mxu0 0
    %1258 = vmatpush.bf16.msra.mxu0 %v1063
    %1259 = vmatpush.bf16.msra.mxu0 %v1062
    %1260 = vmatmul.bf16.gmra.mxu0 %v1250
    %v1261 = vpop.f32.mrf.mxu0
    %v1262 = vadd.f32 0.0, %v1261
    %v1263 = vpop.f32.mrf.mxu0
    %1264 = vdwg.mxu0
    %v1265 = vadd.f32 %v1244, %v1262
    %v1266 = vxor.u32 %v1265, 2147483648
    %v1267 = vmul.f32 %v1266, 1.442695
    %v1268 = vpow.pop %v1267
    %v1269 = vadd.f32 %v1268, 1.0
    %v1270 = vrcp.pop %v1269
    %v1271 = vmul.f32 %v1269, %v1270
    %v1272 = vsub.f32 1.0, %v1271
    %v1273 = vmul.f32 %v1270, %v1272
    %v1274 = vadd.f32 %v1270, %v1273
    %vm1275 = vweird.f32 %v1269
    %vm1276 = vweird.f32 %v1270
    %vm1277 = vmor %vm1275, %vm1276
    %v1278 = vsel %vm1277, %v1270, %v1274
    %v1279 = vand.u32 2147483647, %v1269
    %vm1280 = vcmp.eq.f32.partialorder %v1279, 8.507059e+37
    %v1281 = vand.u32 %v1269, 2147483648
    %v1282 = vor.u32 1.1754944e-38, %v1281
    %v1283 = vsel %vm1280, %v1282, %v1278
    %v1284 = vmul.f32 1.0, %v1283
    %v1285 = vmul.f32 %v1284, %v1236
    %v1286 = vmul.f32 %v1284, 2.0
    %v1287 = vsub.f32 %v1286, 1.0
    %1289 = vrot.lane.b32.xlu0 %v1287, 64
    %v1290 = vpop.permute.xlu0 %1289
    %v1292 = vmul.f32 %v1284, %v1290
    %1294 = vrot.lane.b32.xlu0 %v1292, 32
    %v1295 = vpop.permute.xlu0 %1294
    %v1297 = vadd.f32 %v1285, %v1295
    %v1298 = vtanh.pop %v1297
    %1300 = vrot.lane.b32.xlu0 %v1298, 64
    %v1301 = vpop.permute.xlu0 %1300
    %v1303 = vmul.f32 %v1284, %v1301
    %v1304 = vadd.f32 %v995, %v1033
    %v1305 = vadd.f32 %v1304, %v1047
    %v1306 = vpack.c.bf16 %v1303, %v1303
    %1308 = vrot.lane.b32.xlu0 %v1306, 32
    %v1309 = vpop.permute.xlu0 %1308
    %v1311 = vsel %vm1066, %v1309, 0
    %1313 = vmatpush.bf16.msra.mxu0 0
    %1314 = vmatpush.bf16.msra.mxu0 0
    %1315 = vmatpush.bf16.msra.mxu0 0
    %1316 = vmatpush.bf16.msra.mxu0 0
    %1317 = vmatpush.bf16.msra.mxu0 0
    %1318 = vmatpush.bf16.msra.mxu0 0
    %1319 = vmatpush.bf16.msra.mxu0 %v1063
    %1320 = vmatpush.bf16.msra.mxu0 %v1062
    %1321 = vmatmul.bf16.gmra.mxu0 %v1311
    %v1322 = vpop.f32.mrf.mxu0
    %v1323 = vadd.f32 0.0, %v1322
    %v1324 = vpop.f32.mrf.mxu0
    %1325 = vdwg.mxu0
    %v1326 = vadd.f32 %v1305, %v1323
    %v1327 = vxor.u32 %v1326, 2147483648
    %v1328 = vmul.f32 %v1327, 1.442695
    %v1329 = vpow.pop %v1328
    %v1330 = vadd.f32 %v1329, 1.0
    %v1331 = vrcp.pop %v1330
    %v1332 = vmul.f32 %v1330, %v1331
    %v1333 = vsub.f32 1.0, %v1332
    %v1334 = vmul.f32 %v1331, %v1333
    %v1335 = vadd.f32 %v1331, %v1334
    %vm1336 = vweird.f32 %v1330
    %vm1337 = vweird.f32 %v1331
    %vm1338 = vmor %vm1336, %vm1337
    %v1339 = vsel %vm1338, %v1331, %v1335
    %v1340 = vand.u32 2147483647, %v1330
    %vm1341 = vcmp.eq.f32.partialorder %v1340, 8.507059e+37
    %v1342 = vand.u32 %v1330, 2147483648
    %v1343 = vor.u32 1.1754944e-38, %v1342
    %v1344 = vsel %vm1341, %v1343, %v1339
    %v1345 = vmul.f32 1.0, %v1344
    %v1346 = vmul.f32 %v1345, %v1297
    %v1347 = vmul.f32 %v1345, 2.0
    %v1348 = vsub.f32 %v1347, 1.0
    %1350 = vrot.lane.b32.xlu0 %v1348, 64
    %v1351 = vpop.permute.xlu0 %1350
    %v1353 = vmul.f32 %v1345, %v1351
    %1355 = vrot.lane.b32.xlu0 %v1353, 32
    %v1356 = vpop.permute.xlu0 %1355
    %v1358 = vadd.f32 %v1346, %v1356
    %v1359 = vtanh.pop %v1358
    %1361 = vrot.lane.b32.xlu0 %v1359, 64
    %v1362 = vpop.permute.xlu0 %1361
    %v1364 = vmul.f32 %v1345, %v1362
    %v1365 = vadd.f32 %v998, %v1030
    %v1366 = vadd.f32 %v1365, %v1047
    %v1367 = vpack.c.bf16 %v1364, %v1364
    %1369 = vrot.lane.b32.xlu0 %v1367, 32
    %v1370 = vpop.permute.xlu0 %1369
    %v1372 = vsel %vm1066, %v1370, 0
    %1374 = vmatpush.bf16.msra.mxu0 0
    %1375 = vmatpush.bf16.msra.mxu0 0
    %1376 = vmatpush.bf16.msra.mxu0 0
    %1377 = vmatpush.bf16.msra.mxu0 0
    %1378 = vmatpush.bf16.msra.mxu0 0
    %1379 = vmatpush.bf16.msra.mxu0 0
    %1380 = vmatpush.bf16.msra.mxu0 %v1063
    %1381 = vmatpush.bf16.msra.mxu0 %v1062
    %1382 = vmatmul.bf16.gmra.mxu0 %v1372
    %v1383 = vpop.f32.mrf.mxu0
    %v1384 = vadd.f32 0.0, %v1383
    %v1385 = vpop.f32.mrf.mxu0
    %1386 = vdwg.mxu0
    %v1387 = vadd.f32 %v1366, %v1384
    %v1388 = vxor.u32 %v1387, 2147483648
    %v1389 = vmul.f32 %v1388, 1.442695
    %v1390 = vpow.pop %v1389
    %v1391 = vadd.f32 %v1390, 1.0
    %v1392 = vrcp.pop %v1391
    %v1393 = vmul.f32 %v1391, %v1392
    %v1394 = vsub.f32 1.0, %v1393
    %v1395 = vmul.f32 %v1392, %v1394
    %v1396 = vadd.f32 %v1392, %v1395
    %vm1397 = vweird.f32 %v1391
    %vm1398 = vweird.f32 %v1392
    %vm1399 = vmor %vm1397, %vm1398
    %v1400 = vsel %vm1399, %v1392, %v1396
    %v1401 = vand.u32 2147483647, %v1391
    %vm1402 = vcmp.eq.f32.partialorder %v1401, 8.507059e+37
    %v1403 = vand.u32 %v1391, 2147483648
    %v1404 = vor.u32 1.1754944e-38, %v1403
    %v1405 = vsel %vm1402, %v1404, %v1400
    %v1406 = vmul.f32 1.0, %v1405
    %v1407 = vmul.f32 %v1406, %v1358
    %v1408 = vmul.f32 %v1406, 2.0
    %v1409 = vsub.f32 %v1408, 1.0
    %1411 = vrot.lane.b32.xlu0 %v1409, 64
    %v1412 = vpop.permute.xlu0 %1411
    %v1414 = vmul.f32 %v1406, %v1412
    %1416 = vrot.lane.b32.xlu0 %v1414, 32
    %v1417 = vpop.permute.xlu0 %1416
    %v1419 = vadd.f32 %v1407, %v1417
    %v1420 = vtanh.pop %v1419
    %1422 = vrot.lane.b32.xlu0 %v1420, 64
    %v1423 = vpop.permute.xlu0 %1422
    %v1425 = vmul.f32 %v1406, %v1423
    %v1426 = vadd.f32 %v1001, %v1027
    %v1427 = vadd.f32 %v1426, %v1047
    %v1428 = vpack.c.bf16 %v1425, %v1425
    %1430 = vrot.lane.b32.xlu0 %v1428, 32
    %v1431 = vpop.permute.xlu0 %1430
    %v1433 = vsel %vm1066, %v1431, 0
    %1435 = vmatpush.bf16.msra.mxu0 0
    %1436 = vmatpush.bf16.msra.mxu0 0
    %1437 = vmatpush.bf16.msra.mxu0 0
    %1438 = vmatpush.bf16.msra.mxu0 0
    %1439 = vmatpush.bf16.msra.mxu0 0
    %1440 = vmatpush.bf16.msra.mxu0 0
    %1441 = vmatpush.bf16.msra.mxu0 %v1063
    %1442 = vmatpush.bf16.msra.mxu0 %v1062
    %1443 = vmatmul.bf16.gmra.mxu0 %v1433
    %v1444 = vpop.f32.mrf.mxu0
    %v1445 = vadd.f32 0.0, %v1444
    %v1446 = vpop.f32.mrf.mxu0
    %1447 = vdwg.mxu0
    %v1448 = vadd.f32 %v1427, %v1445
    %v1449 = vxor.u32 %v1448, 2147483648
    %v1450 = vmul.f32 %v1449, 1.442695
    %v1451 = vpow.pop %v1450
    %v1452 = vadd.f32 %v1451, 1.0
    %v1453 = vrcp.pop %v1452
    %v1454 = vmul.f32 %v1452, %v1453
    %v1455 = vsub.f32 1.0, %v1454
    %v1456 = vmul.f32 %v1453, %v1455
    %v1457 = vadd.f32 %v1453, %v1456
    %vm1458 = vweird.f32 %v1452
    %vm1459 = vweird.f32 %v1453
    %vm1460 = vmor %vm1458, %vm1459
    %v1461 = vsel %vm1460, %v1453, %v1457
    %v1462 = vand.u32 2147483647, %v1452
    %vm1463 = vcmp.eq.f32.partialorder %v1462, 8.507059e+37
    %v1464 = vand.u32 %v1452, 2147483648
    %v1465 = vor.u32 1.1754944e-38, %v1464
    %v1466 = vsel %vm1463, %v1465, %v1461
    %v1467 = vmul.f32 1.0, %v1466
    %v1468 = vmul.f32 %v1467, %v1419
    %v1469 = vmul.f32 %v1467, 2.0
    %v1470 = vsub.f32 %v1469, 1.0
    %1472 = vrot.lane.b32.xlu0 %v1470, 64
    %v1473 = vpop.permute.xlu0 %1472
    %v1475 = vmul.f32 %v1467, %v1473
    %1477 = vrot.lane.b32.xlu0 %v1475, 32
    %v1478 = vpop.permute.xlu0 %1477
    %v1480 = vadd.f32 %v1468, %v1478
    %v1481 = vtanh.pop %v1480
    %1483 = vrot.lane.b32.xlu0 %v1481, 64
    %v1484 = vpop.permute.xlu0 %1483
    %v1486 = vmul.f32 %v1467, %v1484
    %v1487 = vadd.f32 %v1004, %v1024
    %v1488 = vadd.f32 %v1487, %v1047
    %v1489 = vpack.c.bf16 %v1486, %v1486
    %1491 = vrot.lane.b32.xlu0 %v1489, 32
    %v1492 = vpop.permute.xlu0 %1491
    %v1494 = vsel %vm1066, %v1492, 0
    %1496 = vmatpush.bf16.msra.mxu0 0
    %1497 = vmatpush.bf16.msra.mxu0 0
    %1498 = vmatpush.bf16.msra.mxu0 0
    %1499 = vmatpush.bf16.msra.mxu0 0
    %1500 = vmatpush.bf16.msra.mxu0 0
    %1501 = vmatpush.bf16.msra.mxu0 0
    %1502 = vmatpush.bf16.msra.mxu0 %v1063
    %1503 = vmatpush.bf16.msra.mxu0 %v1062
    %1504 = vmatmul.bf16.gmra.mxu0 %v1494
    %v1505 = vpop.f32.mrf.mxu0
    %v1506 = vadd.f32 0.0, %v1505
    %v1507 = vpop.f32.mrf.mxu0
    %1508 = vdwg.mxu0
    %v1509 = vadd.f32 %v1488, %v1506
    %v1510 = vxor.u32 %v1509, 2147483648
    %v1511 = vmul.f32 %v1510, 1.442695
    %v1512 = vpow.pop %v1511
    %v1513 = vadd.f32 %v1512, 1.0
    %v1514 = vrcp.pop %v1513
    %v1515 = vmul.f32 %v1513, %v1514
    %v1516 = vsub.f32 1.0, %v1515
    %v1517 = vmul.f32 %v1514, %v1516
    %v1518 = vadd.f32 %v1514, %v1517
    %vm1519 = vweird.f32 %v1513
    %vm1520 = vweird.f32 %v1514
    %vm1521 = vmor %vm1519, %vm1520
    %v1522 = vsel %vm1521, %v1514, %v1518
    %v1523 = vand.u32 2147483647, %v1513
    %vm1524 = vcmp.eq.f32.partialorder %v1523, 8.507059e+37
    %v1525 = vand.u32 %v1513, 2147483648
    %v1526 = vor.u32 1.1754944e-38, %v1525
    %v1527 = vsel %vm1524, %v1526, %v1522
    %v1528 = vmul.f32 1.0, %v1527
    %v1529 = vmul.f32 %v1528, %v1480
    %v1530 = vmul.f32 %v1528, 2.0
    %v1531 = vsub.f32 %v1530, 1.0
    %1533 = vrot.lane.b32.xlu0 %v1531, 64
    %v1534 = vpop.permute.xlu0 %1533
    %v1536 = vmul.f32 %v1528, %v1534
    %1538 = vrot.lane.b32.xlu0 %v1536, 32
    %v1539 = vpop.permute.xlu0 %1538
    %v1541 = vadd.f32 %v1529, %v1539
    %v1542 = vtanh.pop %v1541
    %1544 = vrot.lane.b32.xlu0 %v1542, 64
    %v1545 = vpop.permute.xlu0 %1544
    %v1547 = vmul.f32 %v1528, %v1545
    %v1548 = vld [vmem:[#allocation5 + $0x1a0] sm:$0xff]
    %v1549 = vld [vmem:[#allocation5 + $0x1b0] sm:$0xff]
    %v1550 = vld [vmem:[#allocation5 + $0x1c0] sm:$0xff]
    %v1551 = vld [vmem:[#allocation5 + $0x1d0] sm:$0xff]
    %v1552 = vld [vmem:[#allocation5 + $0x1e0] sm:$0xff]
    %v1553 = vld [vmem:[#allocation5 + $0x1f0] sm:$0xff]
    %v1554 = vld [vmem:[#allocation5 + $0x200] sm:$0xff]
    %v1555 = vld [vmem:[#allocation5 + $0x210] sm:$0xff]
    %v1556 = vld [vmem:[#allocation5 + $0x220] sm:$0xff]
    %v1557 = vld [vmem:[#allocation5 + $0x230] sm:$0xff]
    %v1558 = vld [vmem:[#allocation5 + $0x240] sm:$0xff]
    %v1559 = vld [vmem:[#allocation5 + $0x250] sm:$0xff]
    %v1560 = vld [vmem:[#allocation5 + $0x260] sm:$0xff]
    %v1561 = vld [vmem:[#allocation5 + $0x270] sm:$0xff]
    %v1562 = vld [vmem:[#allocation5 + $0x280] sm:$0xff]
    %v1563 = vld [vmem:[#allocation5 + $0x290] sm:$0xff]
    %1564 = vmatpush.msra.mxu0 0.0
    %1565 = vmatpush.msra.mxu0 0.0
    %1566 = vmatpush.msra.mxu0 0.0
    %1567 = vmatpush.msra.mxu0 0.0
    %1568 = vmatpush.msra.mxu0 0.0
    %1569 = vmatpush.msra.mxu0 0.0
    %1570 = vmatpush.msra.mxu0 0.0
    %1571 = vmatpush.msra.mxu0 0.0
    %1572 = vmatpush.msra.mxu0 %v1563
    %1573 = vmatpush.msra.mxu0 %v1562
    %1574 = vmatpush.msra.mxu0 %v1561
    %1575 = vmatpush.msra.mxu0 %v1560
    %1576 = vmatpush.msra.mxu0 %v1559
    %1577 = vmatpush.msra.mxu0 %v1558
    %1578 = vmatpush.msra.mxu0 %v1557
    %1579 = vmatpush.msra.mxu0 %v1556
    %1580 = vmatmul.f32.gmra.mxu0 %v949
    %v1581 = vpop.f32.mrf.mxu0
    %v1582 = vadd.f32 0.0, %v1581
    %1583 = vdwg.mxu0
    %1584 = vmatpush.msra.mxu0 0.0
    %1585 = vmatpush.msra.mxu0 0.0
    %1586 = vmatpush.msra.mxu0 0.0
    %1587 = vmatpush.msra.mxu0 0.0
    %1588 = vmatpush.msra.mxu0 0.0
    %1589 = vmatpush.msra.mxu0 0.0
    %1590 = vmatpush.msra.mxu0 0.0
    %1591 = vmatpush.msra.mxu0 0.0
    %1592 = vmatpush.msra.mxu0 %v1555
    %1593 = vmatpush.msra.mxu0 %v1554
    %1594 = vmatpush.msra.mxu0 %v1553
    %1595 = vmatpush.msra.mxu0 %v1552
    %1596 = vmatpush.msra.mxu0 %v1551
    %1597 = vmatpush.msra.mxu0 %v1550
    %1598 = vmatpush.msra.mxu0 %v1549
    %1599 = vmatpush.msra.mxu0 %v1548
    %1600 = vmatmul.f32.gmra.mxu0 %v963
    %v1601 = vpop.f32.mrf.mxu0
    %v1602 = vadd.f32 %v1582, %v1601
    %1603 = vdwg.mxu0
    %v1604 = vld [vmem:[#allocation5 + $0x2a0] ss:$0 sm:$0xff]
    %v1605 = vadd.f32 %v1602, %v1604
    %v1606 = vxor.u32 %v1605, 2147483648
    %v1607 = vmul.f32 %v1606, 1.442695
    %v1608 = vpow.pop %v1607
    %v1609 = vadd.f32 %v1608, 1.0
    %v1610 = vrcp.pop %v1609
    %v1611 = vmul.f32 %v1609, %v1610
    %v1612 = vsub.f32 1.0, %v1611
    %v1613 = vmul.f32 %v1610, %v1612
    %v1614 = vadd.f32 %v1610, %v1613
    %vm1615 = vweird.f32 %v1609
    %vm1616 = vweird.f32 %v1610
    %vm1617 = vmor %vm1615, %vm1616
    %v1618 = vsel %vm1617, %v1610, %v1614
    %v1619 = vand.u32 2147483647, %v1609
    %vm1620 = vcmp.eq.f32.partialorder %v1619, 8.507059e+37
    %v1621 = vand.u32 %v1609, 2147483648
    %v1622 = vor.u32 1.1754944e-38, %v1621
    %v1623 = vsel %vm1620, %v1622, %v1618
    %v1624 = vmul.f32 1.0, %v1623
    %v1625 = vmul.f32 %v1624, 2.0
    %v1626 = vsub.f32 %v1625, 1.0
    %1628 = vrot.lane.b32.xlu0 %v1626, 64
    %v1629 = vpop.permute.xlu0 %1628
    %v1631 = vmul.f32 %v1624, %v1629
    %v1632 = vtanh.pop %v1631
    %1634 = vrot.lane.b32.xlu0 %v1632, 96
    %v1635 = vpop.permute.xlu0 %1634
    %v1637 = vmul.f32 %v1624, %v1635
    %v1638 = vld [vmem:[#allocation2 + $0x40] sm:$0xff]
    %v1639 = vld [vmem:[#allocation5 + $0x2b0] sm:$0xff]
    %v1640 = vld [vmem:[#allocation5 + $0x2c0] sm:$0xff]
    %v1641 = vld [vmem:[#allocation5 + $0x2d0] sm:$0xff]
    %v1642 = vld [vmem:[#allocation5 + $0x2e0] sm:$0xff]
    %v1643 = vld [vmem:[#allocation5 + $0x2f0] sm:$0xff]
    %v1644 = vld [vmem:[#allocation5 + $0x300] sm:$0xff]
    %v1645 = vld [vmem:[#allocation5 + $0x310] sm:$0xff]
    %v1646 = vld [vmem:[#allocation5 + $0x320] sm:$0xff]
    %v1647 = vld [vmem:[#allocation5 + $0x330] sm:$0xff]
    %v1648 = vld [vmem:[#allocation5 + $0x340] sm:$0xff]
    %v1649 = vld [vmem:[#allocation5 + $0x350] sm:$0xff]
    %v1650 = vld [vmem:[#allocation5 + $0x360] sm:$0xff]
    %v1651 = vld [vmem:[#allocation5 + $0x370] sm:$0xff]
    %v1652 = vld [vmem:[#allocation5 + $0x380] sm:$0xff]
    %v1653 = vld [vmem:[#allocation5 + $0x390] sm:$0xff]
    %v1654 = vld [vmem:[#allocation5 + $0x3a0] sm:$0xff]
    %v1655 = vld [vmem:[#allocation5 + $0x3b0] ss:$0 sm:$0xff]
    %1656 = vmatpush.msra.mxu0 %v1654
    %1657 = vmatpush.msra.mxu0 %v1653
    %1658 = vmatpush.msra.mxu0 %v1652
    %1659 = vmatpush.msra.mxu0 %v1651
    %1660 = vmatpush.msra.mxu0 %v1650
    %1661 = vmatpush.msra.mxu0 %v1649
    %1662 = vmatpush.msra.mxu0 %v1648
    %1663 = vmatpush.msra.mxu0 %v1647
    %1664 = vmatpush.msra.mxu0 %v1646
    %1665 = vmatpush.msra.mxu0 %v1645
    %1666 = vmatpush.msra.mxu0 %v1644
    %1667 = vmatpush.msra.mxu0 %v1643
    %1668 = vmatpush.msra.mxu0 %v1642
    %1669 = vmatpush.msra.mxu0 %v1641
    %1670 = vmatpush.msra.mxu0 %v1640
    %1671 = vmatpush.msra.mxu0 %v1639
    %1672 = vmatmul.f32.gmra.mxu0 %v1638
    %v1673 = vpop.f32.mrf.mxu0
    %v1674 = vadd.f32 %v1655, %v1673
    %1675 = vdwg.mxu0
    %v1676 = vmax.f32 %v1674, 0.0
    %v1677 = vld [vmem:[#allocation5 + $0x3c0] sm:$0xff]
    %v1678 = vld [vmem:[#allocation5 + $0x3d0] sm:$0xff]
    %v1679 = vld [vmem:[#allocation5 + $0x3e0] sm:$0xff]
    %v1680 = vld [vmem:[#allocation5 + $0x3f0] sm:$0xff]
    %v1681 = vld [vmem:[#allocation5 + $0x400] sm:$0xff]
    %v1682 = vld [vmem:[#allocation5 + $0x410] sm:$0xff]
    %v1683 = vld [vmem:[#allocation5 + $0x420] sm:$0xff]
    %v1684 = vld [vmem:[#allocation5 + $0x430] sm:$0xff]
    %1686 = vrot.lane.b32.xlu0 %v1637, 32
    %v1687 = vpop.permute.xlu0 %1686
    %v1688 = vsel %vm1066, %v1687, 0
    %1690 = vmatpush.msra.mxu0 0.0
    %1691 = vmatpush.msra.mxu0 0.0
    %1692 = vmatpush.msra.mxu0 0.0
    %1693 = vmatpush.msra.mxu0 0.0
    %1694 = vmatpush.msra.mxu0 0.0
    %1695 = vmatpush.msra.mxu0 0.0
    %1696 = vmatpush.msra.mxu0 0.0
    %1697 = vmatpush.msra.mxu0 0.0
    %1698 = vmatpush.msra.mxu0 0.0
    %1699 = vmatpush.msra.mxu0 0.0
    %1700 = vmatpush.msra.mxu0 0.0
    %1701 = vmatpush.msra.mxu0 0.0
    %1702 = vmatpush.msra.mxu0 %v1684
    %1703 = vmatpush.msra.mxu0 %v1683
    %1704 = vmatpush.msra.mxu0 %v1682
    %1705 = vmatpush.msra.mxu0 %v1681
    %1706 = vmatmul.f32.gmra.mxu0 %v1688
    %v1707 = vpop.f32.mrf.mxu0
    %v1708 = vadd.f32 0.0, %v1707
    %1709 = vdwg.mxu0
    %1711 = vrot.lane.b32.xlu0 %v1547, 32
    %v1712 = vpop.permute.xlu0 %1711
    %v1713 = vsel %vm1066, %v1712, 0
    %1715 = vmatpush.msra.mxu0 0.0
    %1716 = vmatpush.msra.mxu0 0.0
    %1717 = vmatpush.msra.mxu0 0.0
    %1718 = vmatpush.msra.mxu0 0.0
    %1719 = vmatpush.msra.mxu0 0.0
    %1720 = vmatpush.msra.mxu0 0.0
    %1721 = vmatpush.msra.mxu0 0.0
    %1722 = vmatpush.msra.mxu0 0.0
    %1723 = vmatpush.msra.mxu0 0.0
    %1724 = vmatpush.msra.mxu0 0.0
    %1725 = vmatpush.msra.mxu0 0.0
    %1726 = vmatpush.msra.mxu0 0.0
    %1727 = vmatpush.msra.mxu0 %v1680
    %1728 = vmatpush.msra.mxu0 %v1679
    %1729 = vmatpush.msra.mxu0 %v1678
    %1730 = vmatpush.msra.mxu0 %v1677
    %1731 = vmatmul.f32.gmra.mxu0 %v1713
    %v1732 = vpop.f32.mrf.mxu0
    %v1733 = vadd.f32 %v1708, %v1732
    %1734 = vdwg.mxu0
    %v1735 = vld [vmem:[#allocation5 + $0x440] sm:$0xff]
    %v1736 = vld [vmem:[#allocation5 + $0x450] sm:$0xff]
    %v1737 = vld [vmem:[#allocation5 + $0x460] sm:$0xff]
    %v1738 = vld [vmem:[#allocation5 + $0x470] sm:$0xff]
    %v1739 = vld [vmem:[#allocation5 + $0x480] sm:$0xff]
    %v1740 = vld [vmem:[#allocation5 + $0x490] sm:$0xff]
    %v1741 = vld [vmem:[#allocation5 + $0x4a0] sm:$0xff]
    %v1742 = vld [vmem:[#allocation5 + $0x4b0] sm:$0xff]
    %v1743 = vld [vmem:[#allocation5 + $0x4c0] sm:$0xff]
    %v1744 = vld [vmem:[#allocation5 + $0x4d0] sm:$0xff]
    %v1745 = vld [vmem:[#allocation5 + $0x4e0] sm:$0xff]
    %v1746 = vld [vmem:[#allocation5 + $0x4f0] sm:$0xff]
    %v1747 = vld [vmem:[#allocation5 + $0x500] sm:$0xff]
    %v1748 = vld [vmem:[#allocation5 + $0x510] sm:$0xff]
    %v1749 = vld [vmem:[#allocation5 + $0x520] sm:$0xff]
    %v1750 = vld [vmem:[#allocation5 + $0x530] sm:$0xff]
    %1751 = vmatpush.msra.mxu0 %v1750
    %1752 = vmatpush.msra.mxu0 %v1749
    %1753 = vmatpush.msra.mxu0 %v1748
    %1754 = vmatpush.msra.mxu0 %v1747
    %1755 = vmatpush.msra.mxu0 %v1746
    %1756 = vmatpush.msra.mxu0 %v1745
    %1757 = vmatpush.msra.mxu0 %v1744
    %1758 = vmatpush.msra.mxu0 %v1743
    %1759 = vmatpush.msra.mxu0 %v1742
    %1760 = vmatpush.msra.mxu0 %v1741
    %1761 = vmatpush.msra.mxu0 %v1740
    %1762 = vmatpush.msra.mxu0 %v1739
    %1763 = vmatpush.msra.mxu0 %v1738
    %1764 = vmatpush.msra.mxu0 %v1737
    %1765 = vmatpush.msra.mxu0 %v1736
    %1766 = vmatpush.msra.mxu0 %v1735
    %1767 = vmatmul.f32.gmra.mxu0 %v1676
    %v1768 = vpop.f32.mrf.mxu0
    %v1769 = vadd.f32 0.0, %v1768
    %1770 = vdwg.mxu0
    %v1771 = vadd.f32 %v1733, %v1769
    %v1772 = vld [vmem:[#allocation5 + $0x540] ss:$0 sm:$0xff]
    %v1773 = vadd.f32 %v1771, %v1772
    %v1774 = vmax.f32 %v1773, 0.0
    %v1775 = vld [vmem:[#allocation5 + $0x550] sm:$0xff]
    %v1776 = vld [vmem:[#allocation5 + $0x560] sm:$0xff]
    %v1777 = vld [vmem:[#allocation5 + $0x570] sm:$0xff]
    %v1778 = vld [vmem:[#allocation5 + $0x580] sm:$0xff]
    %v1779 = vld [vmem:[#allocation5 + $0x590] sm:$0xff]
    %v1780 = vld [vmem:[#allocation5 + $0x5a0] sm:$0xff]
    %v1781 = vld [vmem:[#allocation5 + $0x5b0] sm:$0xff]
    %v1782 = vld [vmem:[#allocation5 + $0x5c0] sm:$0xff]
    %v1783 = vld [vmem:[#allocation5 + $0x5d0] sm:$0xff]
    %v1784 = vld [vmem:[#allocation5 + $0x5e0] sm:$0xff]
    %v1785 = vld [vmem:[#allocation5 + $0x5f0] sm:$0xff]
    %v1786 = vld [vmem:[#allocation5 + $0x600] sm:$0xff]
    %v1787 = vld [vmem:[#allocation5 + $0x610] sm:$0xff]
    %v1788 = vld [vmem:[#allocation5 + $0x620] sm:$0xff]
    %v1789 = vld [vmem:[#allocation5 + $0x630] sm:$0xff]
    %v1790 = vld [vmem:[#allocation5 + $0x640] sm:$0xff]
    %v1791 = vld [vmem:[#allocation5 + $0x650] ss:$0 sm:$0xff]
    %1792 = vmatpush.msra.mxu0 %v1790
    %1793 = vmatpush.msra.mxu0 %v1789
    %1794 = vmatpush.msra.mxu0 %v1788
    %1795 = vmatpush.msra.mxu0 %v1787
    %1796 = vmatpush.msra.mxu0 %v1786
    %1797 = vmatpush.msra.mxu0 %v1785
    %1798 = vmatpush.msra.mxu0 %v1784
    %1799 = vmatpush.msra.mxu0 %v1783
    %1800 = vmatpush.msra.mxu0 %v1782
    %1801 = vmatpush.msra.mxu0 %v1781
    %1802 = vmatpush.msra.mxu0 %v1780
    %1803 = vmatpush.msra.mxu0 %v1779
    %1804 = vmatpush.msra.mxu0 %v1778
    %1805 = vmatpush.msra.mxu0 %v1777
    %1806 = vmatpush.msra.mxu0 %v1776
    %1807 = vmatpush.msra.mxu0 %v1775
    %1808 = vmatmul.f32.gmra.mxu0 %v1774
    %v1809 = vpop.f32.mrf.mxu0
    %v1810 = vadd.f32 %v1791, %v1809
    %1811 = vdwg.mxu0
    %1812 = vst [vmem:[#allocation8] sm:$0xff] %v1810
    // Predicated region
    $region26: #{tpu_custom_call.1} parent=1 // pred_check
      _
    $region27: #{tpu_custom_call.1} parent=1 // pred_check_branch
      %1814 = sbr.rel (0) target = $region29
    $region28: #{tpu_custom_call.1} parent=1 // pred_region
      %1816 = vsyncadd [#allocation4], 0
      %s1818 = sshll.u32 [#allocation8], 4
      %s1819 = int_to_ptr.vmem [resolvable:$true] %s1818
      %s1820 = sshll.u32 %s3, 4
      %s1821 = int_to_ptr.hbm [resolvable:$true] %s1820
      %1823 = dma.vmem_to_hbm [thread:$0]  %s1819, 128, %s1821, [#allocation4]
    $region29: #{tpu_custom_call.1} parent=1 // pred_fallthru
      _
    // Predicated region
    $region30: #{tpu_custom_call.1} parent=1 // pred_check
      _
    $region31: #{tpu_custom_call.1} parent=1 // pred_check_branch
      %1825 = sbr.rel (0) target = $region33
    $region32: #{tpu_custom_call.1} parent=1 // pred_region
      %1827 = dma.done [#allocation4], 128
    $region33: #{tpu_custom_call.1} parent=1 // pred_fallthru
      _
    %1828 = vsyncpa [#allocation3], 1
    %1829 = vsyncpa [#allocation6], 1
    %1830 = vsyncpa [#allocation4], 1

</llo_original>
